<compile_context>
chip_gen: v6e
topology: v6e:2x2x1
jax: 0.10.0
libtpu: 0.0.40
codegen_flags: <defaults>
</compile_context>

<pallas_src>
import math
from typing import NamedTuple, Optional

import jax
import jax.numpy as jnp
from jax import lax
from jax.experimental import pallas as pl
from jax.experimental.pallas import tpu as pltpu

# ---------------- config (small, consistent with the module) ----------------
B = 2            # batch_size
S = 8            # seq_len
SUB = 3          # subtokens_per_token
D = 32           # d_model
V = 64           # vocab_size
NT = 8           # num_node_types
TT = 5           # num_token_types
H = 4            # attention heads
DH = D // H
F = 64           # ffn hidden dim
NBINS = 4        # num_distance_bins (relative distances; unused by stand-in core)

CIN = (SUB + 2) * D      # token subtokens + node-type + token-type embeddings, concatenated
LPAD = 256               # lane-padded logits width (SUB*V = 192 -> 256, unmasked stores)
WPACK = 3 * 128          # lane width of the packed D-row weight slab


class CodeTransformerOutput(NamedTuple):
    loss: Optional[jnp.ndarray]
    logits: jnp.ndarray
    attentions: Optional[jnp.ndarray]
    pointer_gates: Optional[jnp.ndarray] = None
    pointer_attentions: Optional[jnp.ndarray] = None
    pointer_attention_distributions: Optional[jnp.ndarray] = None


# ----------------------------- fused Pallas kernel ---------------------------
def _layernorm(x, g, b, eps=1e-5):
    mu = jnp.mean(x, axis=-1, keepdims=True)
    var = jnp.mean((x - mu) ** 2, axis=-1, keepdims=True)
    return (x - mu) * lax.rsqrt(var + eps) * g + b


def _fused_forward_kernel(emb_ref, mask_ref, oh_ref,
                          tlw_ref, d32w_ref, w2_ref, embbd_ref, vec_ref,
                          logits_ref, ce_ref):
    f32 = jnp.float32
    bf16 = jnp.bfloat16

    nb = mask_ref.shape[0]          # batch elements in this block (1 or B)

    # --- packed small vectors (one DMA) -------------------------------------
    tlb  = vec_ref[0:1, :D]
    bqkv = vec_ref[1:2, :3 * D]
    bo   = vec_ref[2:3, :D]
    ln1g = vec_ref[3:4, :D]
    ln1b = vec_ref[4:5, :D]
    b1   = vec_ref[5:6, :F]
    b2   = vec_ref[6:7, :D]
    ln2g = vec_ref[7:8, :D]
    ln2b = vec_ref[8:9, :D]
    bup  = vec_ref[9:10, :SUB * D]

    # --- packed D-row weights (one DMA, lane-group aligned slices) ----------
    wqkv = d32w_ref[:, 0:3 * D]                 # (D, 3D)
    upw  = d32w_ref[:, 128:128 + SUB * D]       # (D, SUB*D)
    w1   = d32w_ref[:, 256:256 + F]             # (D, F)
    wo   = d32w_ref[:, 320:320 + D]             # (D, D)

    # --- embedding down-projection: (rows, CIN) @ (CIN, D) -------------------
    x_cat = emb_ref[...]                                               # (rows, CIN) bf16
    tok = jnp.dot(x_cat, tlw_ref[...], preferred_element_type=f32) + tlb   # (rows, D) f32

    # --- transformer core (stand-in post-LN MHA + FFN) -----------------------
    # TODO(synk): the CodeTransformer relative-distance attention core is not provided
    # in the source; a standard post-LN MHA+FFN encoder layer is used as the core.
    qkv = jnp.dot(tok.astype(bf16), wqkv,
                  preferred_element_type=f32) + bqkv                   # (rows, 3D) f32

    scale = 1.0 / math.sqrt(DH)
    ctx_rows = []
    for bidx in range(nb):                                             # static, nb <= B
        m = mask_ref[bidx]                                             # (S, S); 1 = cannot attend
        r0 = bidx * S
        heads = []
        for h in range(H):                                             # static, H = 4
            q_h = qkv[r0:r0 + S, h * DH:(h + 1) * DH].astype(bf16)
            k_h = qkv[r0:r0 + S, D + h * DH:D + (h + 1) * DH].astype(bf16)
            v_h = qkv[r0:r0 + S, 2 * D + h * DH:2 * D + (h + 1) * DH].astype(bf16)
            s_h = jnp.einsum('qd,kd->qk', q_h, k_h,
                             preferred_element_type=f32) * scale       # (S, S)
            s_h = jnp.where(m > 0.5, -1e30, s_h)
            s_h = s_h - jnp.max(s_h, axis=-1, keepdims=True)
            p = jnp.exp(s_h)
            p = p * pl.reciprocal(jnp.sum(p, axis=-1, keepdims=True), approx=True)
            heads.append(jnp.dot(p.astype(bf16), v_h,
                                 preferred_element_type=f32))          # (S, DH)
        ctx_rows.append(jnp.concatenate(heads, axis=-1))               # (S, D)
    ctx = jnp.concatenate(ctx_rows, axis=0).astype(bf16)               # (rows, D)

    attn = jnp.dot(ctx, wo, preferred_element_type=f32) + bo           # (rows, D)

    h1 = _layernorm(tok + attn, ln1g, ln1b)
    ff = jnp.maximum(jnp.dot(h1.astype(bf16), w1,
                             preferred_element_type=f32) + b1, 0.0)
    ff = jnp.dot(ff.astype(bf16), w2_ref[...],
                 preferred_element_type=f32) + b2
    y = _layernorm(h1 + ff, ln2g, ln2b)                                # (rows, D)

    # --- LM head: fused up-projection + block-diag tied-embedding logits -----
    ups = jnp.dot(y.astype(bf16), upw,
                  preferred_element_type=f32) + bup                    # (rows, SUB*D)
    lg = jnp.dot(ups.astype(bf16), embbd_ref[...],
                 preferred_element_type=f32)                           # (rows, LPAD)
    logits_ref[...] = lg                                               # lane-dense slab store

    # --- fused CrossEntropy(ignore_index=-1) partial sums --------------------
    oh = oh_ref[...]                                                   # (rows, LPAD) one-hot
    loss_sum = jnp.zeros((1, 1), f32)
    cnt_sum = jnp.zeros((1, 1), f32)
    for s in range(SUB):                                               # static, SUB = 3
        lg_s = lg[:, s * V:(s + 1) * V]                                # (rows, V)
        oh_s = oh[:, s * V:(s + 1) * V]
        mx = jnp.max(lg_s, axis=-1, keepdims=True)
        lse = mx + jnp.log(jnp.sum(jnp.exp(lg_s - mx), axis=-1, keepdims=True))
        picked = jnp.sum(oh_s * lg_s, axis=-1, keepdims=True)          # 0 where ignored
        valid = jnp.sum(oh_s, axis=-1, keepdims=True)                  # 1 valid / 0 ignored
        loss_sum = loss_sum + jnp.sum(valid * (lse - picked), keepdims=True)
        cnt_sum = cnt_sum + jnp.sum(valid, keepdims=True)

    lane = lax.broadcasted_iota(jnp.int32, (1, 128), 1)
    ce_ref[0] = (jnp.where(lane == 0, loss_sum, 0.0)
                 + jnp.where(lane == 1, cnt_sum, 0.0))


def _single_tensorcore() -> bool:
    """True on 1-TensorCore chips (v5e/v6e) -> fold batch into one grid step."""
    try:
        kind = jax.devices()[0].device_kind.lower()
    except Exception:
        return False
    return ("lite" in kind) or ("v5e" in kind) or ("v6e" in kind)


def fused_forward(emb_flat, mask, onehot_flat, tlw, d32w, w2, emb_bd, vecs, *, nb):
    steps = B // nb
    rows = nb * S
    full2 = lambda i: (0, 0)
    return pl.pallas_call(
        _fused_forward_kernel,
        out_shape=(jax.ShapeDtypeStruct((B * S, LPAD), jnp.float32),
                   jax.ShapeDtypeStruct((steps, 1, 128), jnp.float32)),
        grid=(steps,),
        in_specs=[
            pl.BlockSpec((rows, CIN), lambda i: (i, 0)),        # concatenated embeddings (bf16)
            pl.BlockSpec((nb, S, S), lambda i: (i, 0, 0)),      # attention mask
            pl.BlockSpec((rows, LPAD), lambda i: (i, 0)),       # one-hot CE targets
            pl.BlockSpec((CIN, D), full2),                      # token_linear weight
            pl.BlockSpec((D, WPACK), full2),                    # packed [wqkv | upw | w1 | wo]
            pl.BlockSpec((F, D), full2),                        # ffn w2
            pl.BlockSpec((SUB * D, LPAD), full2),               # block-diag tied embedding
            pl.BlockSpec((16, 128), full2),                     # packed biases / LN vectors
        ],
        out_specs=(pl.BlockSpec((rows, LPAD), lambda i: (i, 0)),
                   pl.BlockSpec((1, 1, 128), lambda i: (i, 0, 0))),
        compiler_params=pltpu.CompilerParams(dimension_semantics=("parallel",)),
    )(emb_flat, mask, onehot_flat, tlw, d32w, w2, emb_bd, vecs)


# ------------------------------ parameters ----------------------------------
def _xavier(key, shape):
    fan_in, fan_out = shape[0], shape[1]
    limit = math.sqrt(6.0 / (fan_in + fan_out))
    return jax.random.uniform(key, shape, jnp.float32, -limit, limit)


def init_params(key):
    ks = jax.random.split(key, 16)
    return {
        # encoder embeddings / down-projection
        "token_embedding": _xavier(ks[0], (V, D)),
        "node_type_embedding": _xavier(ks[1], (NT, D)),
        "token_type_embedding": _xavier(ks[2], (TT, D)),
        "token_linear_w": _xavier(ks[3], (CIN, D)),
        "token_linear_b": jnp.zeros((1, D), jnp.float32),
        # transformer core (stand-in encoder layer)
        "wq": _xavier(ks[4], (D, D)), "wk": _xavier(ks[5], (D, D)),
        "wv": _xavier(ks[6], (D, D)), "wo": _xavier(ks[7], (D, D)),
        "bq": jnp.zeros((1, D), jnp.float32), "bk": jnp.zeros((1, D), jnp.float32),
        "bv": jnp.zeros((1, D), jnp.float32), "bo": jnp.zeros((1, D), jnp.float32),
        "ln1_g": jnp.ones((1, D), jnp.float32), "ln1_b": jnp.zeros((1, D), jnp.float32),
        "w1": _xavier(ks[8], (D, F)), "b1": jnp.zeros((1, F), jnp.float32),
        "w2": _xavier(ks[9], (F, D)), "b2": jnp.zeros((1, D), jnp.float32),
        "ln2_g": jnp.ones((1, D), jnp.float32), "ln2_b": jnp.zeros((1, D), jnp.float32),
        # LM head up-projection (torch layout: out feature f = d_out*SUB + s)
        "token_linear_up_w": _xavier(ks[10], (D, SUB * D)),
        "token_linear_up_b": jnp.zeros((1, SUB * D), jnp.float32),
    }


# ------------------------------ forward pass ---------------------------------
def transformer_language_model_forward(params, input_tokens, input_node_types,
                                        relative_distances, input_token_types,
                                        attention_mask, pad_mask, labels):
    bf = jnp.bfloat16

    # --- embedding gathers (plain-JAX glue) ---
    tok_emb = jnp.take(params["token_embedding"], input_tokens, axis=0)           # (B,S,SUB,D)
    node_emb = jnp.take(params["node_type_embedding"], input_node_types, axis=0)  # (B,S,D)
    tt_emb = jnp.take(params["token_type_embedding"], input_token_types, axis=0)  # (B,S,D)
    emb_cat = jnp.concatenate(
        [tok_emb, node_emb[:, :, None, :], tt_emb[:, :, None, :]], axis=-2
    ).reshape(B * S, CIN).astype(bf)
    # input_nonlinearity = None in this config.
    # TODO(synk): language_embedding path skipped (num_languages=None in this config).

    mask = jnp.clip(attention_mask + pad_mask[:, None, :], 0.0, 1.0)              # (B,S,S)

    # lane-dense one-hot CE targets matching the logits layout; ignore_index=-1 rows are zero
    onehot = jax.nn.one_hot(labels.astype(jnp.int32), V, dtype=jnp.float32)       # (B,S,SUB,V)
    onehot = onehot.reshape(B, S, SUB * V)
    onehot = jnp.pad(onehot, ((0, 0), (0, 0), (0, LPAD - SUB * V))).reshape(B * S, LPAD)

    # --- weight re-layouts / packing (tiny, done once outside the kernel) ---
    wqkv = jnp.concatenate([params["wq"], params["wk"], params["wv"]], axis=1)    # (D, 3D)
    bqkv = jnp.concatenate([params["bq"], params["bk"], params["bv"]], axis=1)    # (1, 3D)

    # torch head: up(y).reshape(B,S,D,SUB).transpose(2,3) @ emb.T
    #   => permute up-proj to subtoken-major output features, then a block-diagonal
    #      tied-embedding (SUB*D, SUB*V) gives all logits in one dot.
    upw = params["token_linear_up_w"].reshape(D, D, SUB).transpose(0, 2, 1).reshape(D, SUB * D)
    upb = params["token_linear_up_b"].reshape(1, D, SUB).transpose(0, 2, 1).reshape(1, SUB * D)
    emb_bd = jnp.kron(jnp.eye(SUB, dtype=jnp.float32), params["token_embedding"].T)  # (SUB*D, SUB*V)
    emb_bd = jnp.pad(emb_bd, ((0, 0), (0, LPAD - SUB * V))).astype(bf)                # (SUB*D, 256)

    # packed D-row weight slab (lane-group aligned so every in-kernel slice stays
    # inside one 128-lane group): [0:96]=wqkv, [128:224]=upw, [256:320]=w1, [320:352]=wo
    d32w = jnp.zeros((D, WPACK), jnp.float32)
    d32w = d32w.at[:, 0:3 * D].set(wqkv)
    d32w = d32w.at[:, 128:128 + SUB * D].set(upw)
    d32w = d32w.at[:, 256:256 + F].set(params["w1"])
    d32w = d32w.at[:, 320:320 + D].set(params["wo"])
    d32w = d32w.astype(bf)

    # packed small bias / layernorm vectors -> one (16,128) f32 DMA
    vecs = jnp.zeros((16, 128), jnp.float32)
    vecs = vecs.at[0, :D].set(params["token_linear_b"][0])
    vecs = vecs.at[1, :3 * D].set(bqkv[0])
    vecs = vecs.at[2, :D].set(params["bo"][0])
    vecs = vecs.at[3, :D].set(params["ln1_g"][0])
    vecs = vecs.at[4, :D].set(params["ln1_b"][0])
    vecs = vecs.at[5, :F].set(params["b1"][0])
    vecs = vecs.at[6, :D].set(params["b2"][0])
    vecs = vecs.at[7, :D].set(params["ln2_g"][0])
    vecs = vecs.at[8, :D].set(params["ln2_b"][0])
    vecs = vecs.at[9, :SUB * D].set(upb[0])

    # fold batch on single-TC chips (v5e/v6e); keep a 2-way parallel grid otherwise (v7x / megacore)
    nb = B if _single_tensorcore() else 1

    logits_flat, ce = fused_forward(
        emb_cat, mask, onehot,
        params["token_linear_w"].astype(bf), d32w, params["w2"].astype(bf),
        emb_bd, vecs, nb=nb)

    logits = logits_flat[:, :SUB * V].reshape(B, S, SUB, V)    # strip lane padding (free)

    # CrossEntropyLoss(ignore_index=-1), mean over non-ignored
    loss = jnp.sum(ce[:, 0, 0]) / jnp.maximum(jnp.sum(ce[:, 0, 1]), 1.0)
    return CodeTransformerOutput(loss=loss, logits=logits, attentions=None)


# ---------------------------------- main -------------------------------------
if __name__ == "__main__":
    key = jax.random.PRNGKey(0)
    kp, k1, k2, k3, k4, k5, k6 = jax.random.split(key, 7)

    params = init_params(kp)

    input_tokens = jax.random.randint(k1, (B, S, SUB), 0, V)
    input_node_types = jax.random.randint(k2, (B, S), 0, NT)
    input_token_types = jax.random.randint(k3, (B, S), 0, TT)
    attention_mask = jnp.zeros((B, S, S), jnp.float32)        # 0 = may attend
    pad_mask = jnp.zeros((B, S), jnp.float32)                 # 0 = not padded
    labels = jax.random.randint(k4, (B, S, SUB), 0, V)
    ignore = jax.random.bernoulli(k5, 0.2, (B, S, SUB))
    labels = jnp.where(ignore, -1, labels)

    # relative distances: list of (index tensor, bin-value tensor) tuples (unused by stand-in core)
    rel_idx = jax.random.randint(k6, (B, S, S), 0, NBINS)
    rel_bins = jnp.linspace(-1.0, 1.0, NBINS)[:, None].repeat(B, axis=1)
    relative_distances = [(rel_idx, rel_bins)]

    fwd = jax.jit(transformer_language_model_forward)
    out = fwd(params, input_tokens, input_node_types, relative_distances,
              input_token_types, attention_mask, pad_mask, labels)

    jax.block_until_ready(out.logits)
    jax.block_until_ready(out.loss)

    assert out.logits.shape == (B, S, SUB, V), out.logits.shape
    assert jnp.isfinite(out.loss), out.loss
    print("KERNEL_OK")
</pallas_src>

<mosaic_0001>
module attributes {stable_mosaic.version = 11 : i64} {
  func.func @_fused_forward_kernel(%arg0: i32, %arg1: memref<8x160xbf16, #tpu.memory_space<vmem>>, %arg2: memref<1x8x8xf32, #tpu.memory_space<vmem>>, %arg3: memref<8x256xf32, #tpu.memory_space<vmem>>, %arg4: memref<160x32xbf16, #tpu.memory_space<vmem>>, %arg5: memref<32x384xbf16, #tpu.memory_space<vmem>>, %arg6: memref<64x32xbf16, #tpu.memory_space<vmem>>, %arg7: memref<96x256xbf16, #tpu.memory_space<vmem>>, %arg8: memref<16x128xf32, #tpu.memory_space<vmem>>, %arg9: memref<8x256xf32, #tpu.memory_space<vmem>>, %arg10: memref<1x1x128xf32, #tpu.memory_space<vmem>>) attributes {dimension_semantics = [#tpu.dimension_semantics<parallel>], iteration_bounds = array<i64: 2>, scalar_prefetch = 0 : i64, scratch_operands = 0 : i64, tpu.core_type = #tpu.core_type<tc>, window_params = [{transform_indices = @transform_0, window_bounds = array<i64: 8, 160>}, {transform_indices = @transform_1, window_bounds = array<i64: 1, 8, 8>}, {transform_indices = @transform_2, window_bounds = array<i64: 8, 256>}, {pipeline_mode = #tpu.pipeline_mode<synchronous>, transform_indices = @transform_3, window_bounds = array<i64: 160, 32>}, {pipeline_mode = #tpu.pipeline_mode<synchronous>, transform_indices = @transform_4, window_bounds = array<i64: 32, 384>}, {pipeline_mode = #tpu.pipeline_mode<synchronous>, transform_indices = @transform_5, window_bounds = array<i64: 64, 32>}, {pipeline_mode = #tpu.pipeline_mode<synchronous>, transform_indices = @transform_6, window_bounds = array<i64: 96, 256>}, {pipeline_mode = #tpu.pipeline_mode<synchronous>, transform_indices = @transform_7, window_bounds = array<i64: 16, 128>}, {transform_indices = @transform_8, window_bounds = array<i64: 8, 256>}, {transform_indices = @transform_9, window_bounds = array<i64: 1, 1, 128>}]} {
    %c0 = arith.constant 0 : index
    %c0_0 = arith.constant 0 : index
    %0 = vector.load %arg8[%c0, %c0_0] : memref<16x128xf32, #tpu.memory_space<vmem>>, vector<1x32xf32>
    %c1 = arith.constant 1 : index
    %c0_1 = arith.constant 0 : index
    %1 = vector.load %arg8[%c1, %c0_1] : memref<16x128xf32, #tpu.memory_space<vmem>>, vector<1x96xf32>
    %c2 = arith.constant 2 : index
    %c0_2 = arith.constant 0 : index
    %2 = vector.load %arg8[%c2, %c0_2] : memref<16x128xf32, #tpu.memory_space<vmem>>, vector<1x32xf32>
    %c3 = arith.constant 3 : index
    %c0_3 = arith.constant 0 : index
    %3 = vector.load %arg8[%c3, %c0_3] : memref<16x128xf32, #tpu.memory_space<vmem>>, vector<1x32xf32>
    %c4 = arith.constant 4 : index
    %c0_4 = arith.constant 0 : index
    %4 = vector.load %arg8[%c4, %c0_4] : memref<16x128xf32, #tpu.memory_space<vmem>>, vector<1x32xf32>
    %c5 = arith.constant 5 : index
    %c0_5 = arith.constant 0 : index
    %5 = vector.load %arg8[%c5, %c0_5] : memref<16x128xf32, #tpu.memory_space<vmem>>, vector<1x64xf32>
    %c6 = arith.constant 6 : index
    %c0_6 = arith.constant 0 : index
    %6 = vector.load %arg8[%c6, %c0_6] : memref<16x128xf32, #tpu.memory_space<vmem>>, vector<1x32xf32>
    %c7 = arith.constant 7 : index
    %c0_7 = arith.constant 0 : index
    %7 = vector.load %arg8[%c7, %c0_7] : memref<16x128xf32, #tpu.memory_space<vmem>>, vector<1x32xf32>
    %c8 = arith.constant 8 : index
    %c0_8 = arith.constant 0 : index
    %8 = vector.load %arg8[%c8, %c0_8] : memref<16x128xf32, #tpu.memory_space<vmem>>, vector<1x32xf32>
    %c9 = arith.constant 9 : index
    %c0_9 = arith.constant 0 : index
    %9 = vector.load %arg8[%c9, %c0_9] : memref<16x128xf32, #tpu.memory_space<vmem>>, vector<1x96xf32>
    %c0_10 = arith.constant 0 : index
    %c0_11 = arith.constant 0 : index
    %10 = vector.load %arg5[%c0_10, %c0_11] : memref<32x384xbf16, #tpu.memory_space<vmem>>, vector<32x96xbf16>
    %c0_12 = arith.constant 0 : index
    %c128 = arith.constant 128 : index
    %11 = vector.load %arg5[%c0_12, %c128] : memref<32x384xbf16, #tpu.memory_space<vmem>>, vector<32x96xbf16>
    %c0_13 = arith.constant 0 : index
    %c256 = arith.constant 256 : index
    %12 = vector.load %arg5[%c0_13, %c256] : memref<32x384xbf16, #tpu.memory_space<vmem>>, vector<32x64xbf16>
    %c0_14 = arith.constant 0 : index
    %c320 = arith.constant 320 : index
    %13 = vector.load %arg5[%c0_14, %c320] : memref<32x384xbf16, #tpu.memory_space<vmem>>, vector<32x32xbf16>
    %c0_15 = arith.constant 0 : index
    %c0_16 = arith.constant 0 : index
    %14 = vector.load %arg1[%c0_15, %c0_16] : memref<8x160xbf16, #tpu.memory_space<vmem>>, vector<8x160xbf16>
    %c0_17 = arith.constant 0 : index
    %c0_18 = arith.constant 0 : index
    %15 = vector.load %arg4[%c0_17, %c0_18] : memref<160x32xbf16, #tpu.memory_space<vmem>>, vector<160x32xbf16>
    %cst = arith.constant dense<0.000000e+00> : vector<8x32xf32>
    %16 = tpu.matmul %14, %15, %cst {dimension_numbers = #tpu.dot_dimension_numbers<[1], [0], [0], [1], [0, 0, 1, 1], [], []>} : vector<8x160xbf16>, vector<160x32xbf16>, vector<8x32xf32> -> vector<8x32xf32>
    %17 = vector.broadcast %0 : vector<1x32xf32> to vector<8x32xf32>
    %18 = arith.addf %16, %17 : vector<8x32xf32>
    %19 = arith.truncf %18 : vector<8x32xf32> to vector<8x32xbf16>
    %cst_19 = arith.constant dense<0.000000e+00> : vector<8x96xf32>
    %20 = tpu.matmul %19, %10, %cst_19 {dimension_numbers = #tpu.dot_dimension_numbers<[1], [0], [0], [1], [0, 0, 1, 1], [], []>} : vector<8x32xbf16>, vector<32x96xbf16>, vector<8x96xf32> -> vector<8x96xf32>
    %21 = vector.broadcast %1 : vector<1x96xf32> to vector<8x96xf32>
    %22 = arith.addf %20, %21 : vector<8x96xf32>
    %c0_20 = arith.constant 0 : index
    %c0_21 = arith.constant 0 : index
    %c0_22 = arith.constant 0 : index
    %23 = vector.load %arg2[%c0_20, %c0_21, %c0_22] : memref<1x8x8xf32, #tpu.memory_space<vmem>>, vector<1x8x8xf32>
    %24 = vector.shape_cast %23 : vector<1x8x8xf32> to vector<8x8xf32>
    %25 = vector.extract_strided_slice %22 {offsets = [0, 0], sizes = [8, 8], strides = [1, 1]} : vector<8x96xf32> to vector<8x8xf32>
    %26 = arith.truncf %25 : vector<8x8xf32> to vector<8x8xbf16>
    %27 = vector.extract_strided_slice %22 {offsets = [0, 32], sizes = [8, 8], strides = [1, 1]} : vector<8x96xf32> to vector<8x8xf32>
    %28 = arith.truncf %27 : vector<8x8xf32> to vector<8x8xbf16>
    %29 = vector.extract_strided_slice %22 {offsets = [0, 64], sizes = [8, 8], strides = [1, 1]} : vector<8x96xf32> to vector<8x8xf32>
    %30 = arith.truncf %29 : vector<8x8xf32> to vector<8x8xbf16>
    "tpu.trace_start"() <{level = 10 : i32, message = "qd,kd->qk"}> : () -> ()
    %cst_23 = arith.constant dense<0.000000e+00> : vector<8x8xf32>
    %31 = tpu.matmul %26, %28, %cst_23 {dimension_numbers = #tpu.dot_dimension_numbers<[1], [1], [0], [0], [0, 0, 1, 0], [], []>} : vector<8x8xbf16>, vector<8x8xbf16>, vector<8x8xf32> -> vector<8x8xf32>
    "tpu.trace_stop"() : () -> ()
    %cst_24 = arith.constant 0.353553385 : f32
    %32 = vector.broadcast %cst_24 : f32 to vector<8x8xf32>
    %33 = arith.mulf %31, %32 : vector<8x8xf32>
    %cst_25 = arith.constant 5.000000e-01 : f32
    %34 = vector.broadcast %cst_25 : f32 to vector<8x8xf32>
    %35 = arith.cmpf ogt, %24, %34 : vector<8x8xf32>
    %cst_26 = arith.constant -1.000000e+30 : f32
    %36 = vector.broadcast %cst_26 : f32 to vector<8x8xf32>
    %37 = arith.select %35, %36, %33 : vector<8x8xi1>, vector<8x8xf32>
    %cst_27 = arith.constant dense<0xFF800000> : vector<8xf32>
    %38 = vector.multi_reduction <maximumf>, %37, %cst_27 [1] : vector<8x8xf32> to vector<8xf32>
    %39 = vector.shape_cast %38 : vector<8xf32> to vector<8x1xf32>
    %40 = vector.broadcast %39 : vector<8x1xf32> to vector<8x8xf32>
    %41 = arith.subf %37, %40 : vector<8x8xf32>
    %42 = math.exp %41 : vector<8x8xf32>
    %cst_28 = arith.constant dense<0.000000e+00> : vector<8xf32>
    %43 = vector.multi_reduction <add>, %42, %cst_28 [1] : vector<8x8xf32> to vector<8xf32>
    %44 = vector.shape_cast %43 : vector<8xf32> to vector<8x1xf32>
    %45 = tpu.reciprocal %44 {approx = true} : vector<8x1xf32> -> vector<8x1xf32>
    %46 = vector.broadcast %45 : vector<8x1xf32> to vector<8x8xf32>
    %47 = arith.mulf %42, %46 : vector<8x8xf32>
    %48 = arith.truncf %47 : vector<8x8xf32> to vector<8x8xbf16>
    %cst_29 = arith.constant dense<0.000000e+00> : vector<8x8xf32>
    %49 = tpu.matmul %48, %30, %cst_29 {dimension_numbers = #tpu.dot_dimension_numbers<[1], [0], [0], [1], [0, 0, 1, 1], [], []>} : vector<8x8xbf16>, vector<8x8xbf16>, vector<8x8xf32> -> vector<8x8xf32>
    %50 = vector.extract_strided_slice %22 {offsets = [0, 8], sizes = [8, 8], strides = [1, 1]} : vector<8x96xf32> to vector<8x8xf32>
    %51 = arith.truncf %50 : vector<8x8xf32> to vector<8x8xbf16>
    %52 = vector.extract_strided_slice %22 {offsets = [0, 40], sizes = [8, 8], strides = [1, 1]} : vector<8x96xf32> to vector<8x8xf32>
    %53 = arith.truncf %52 : vector<8x8xf32> to vector<8x8xbf16>
    %54 = vector.extract_strided_slice %22 {offsets = [0, 72], sizes = [8, 8], strides = [1, 1]} : vector<8x96xf32> to vector<8x8xf32>
    %55 = arith.truncf %54 : vector<8x8xf32> to vector<8x8xbf16>
    "tpu.trace_start"() <{level = 10 : i32, message = "qd,kd->qk"}> : () -> ()
    %cst_30 = arith.constant dense<0.000000e+00> : vector<8x8xf32>
    %56 = tpu.matmul %51, %53, %cst_30 {dimension_numbers = #tpu.dot_dimension_numbers<[1], [1], [0], [0], [0, 0, 1, 0], [], []>} : vector<8x8xbf16>, vector<8x8xbf16>, vector<8x8xf32> -> vector<8x8xf32>
    "tpu.trace_stop"() : () -> ()
    %cst_31 = arith.constant 0.353553385 : f32
    %57 = vector.broadcast %cst_31 : f32 to vector<8x8xf32>
    %58 = arith.mulf %56, %57 : vector<8x8xf32>
    %cst_32 = arith.constant 5.000000e-01 : f32
    %59 = vector.broadcast %cst_32 : f32 to vector<8x8xf32>
    %60 = arith.cmpf ogt, %24, %59 : vector<8x8xf32>
    %cst_33 = arith.constant -1.000000e+30 : f32
    %61 = vector.broadcast %cst_33 : f32 to vector<8x8xf32>
    %62 = arith.select %60, %61, %58 : vector<8x8xi1>, vector<8x8xf32>
    %cst_34 = arith.constant dense<0xFF800000> : vector<8xf32>
    %63 = vector.multi_reduction <maximumf>, %62, %cst_34 [1] : vector<8x8xf32> to vector<8xf32>
    %64 = vector.shape_cast %63 : vector<8xf32> to vector<8x1xf32>
    %65 = vector.broadcast %64 : vector<8x1xf32> to vector<8x8xf32>
    %66 = arith.subf %62, %65 : vector<8x8xf32>
    %67 = math.exp %66 : vector<8x8xf32>
    %cst_35 = arith.constant dense<0.000000e+00> : vector<8xf32>
    %68 = vector.multi_reduction <add>, %67, %cst_35 [1] : vector<8x8xf32> to vector<8xf32>
    %69 = vector.shape_cast %68 : vector<8xf32> to vector<8x1xf32>
    %70 = tpu.reciprocal %69 {approx = true} : vector<8x1xf32> -> vector<8x1xf32>
    %71 = vector.broadcast %70 : vector<8x1xf32> to vector<8x8xf32>
    %72 = arith.mulf %67, %71 : vector<8x8xf32>
    %73 = arith.truncf %72 : vector<8x8xf32> to vector<8x8xbf16>
    %cst_36 = arith.constant dense<0.000000e+00> : vector<8x8xf32>
    %74 = tpu.matmul %73, %55, %cst_36 {dimension_numbers = #tpu.dot_dimension_numbers<[1], [0], [0], [1], [0, 0, 1, 1], [], []>} : vector<8x8xbf16>, vector<8x8xbf16>, vector<8x8xf32> -> vector<8x8xf32>
    %75 = vector.extract_strided_slice %22 {offsets = [0, 16], sizes = [8, 8], strides = [1, 1]} : vector<8x96xf32> to vector<8x8xf32>
    %76 = arith.truncf %75 : vector<8x8xf32> to vector<8x8xbf16>
    %77 = vector.extract_strided_slice %22 {offsets = [0, 48], sizes = [8, 8], strides = [1, 1]} : vector<8x96xf32> to vector<8x8xf32>
    %78 = arith.truncf %77 : vector<8x8xf32> to vector<8x8xbf16>
    %79 = vector.extract_strided_slice %22 {offsets = [0, 80], sizes = [8, 8], strides = [1, 1]} : vector<8x96xf32> to vector<8x8xf32>
    %80 = arith.truncf %79 : vector<8x8xf32> to vector<8x8xbf16>
    "tpu.trace_start"() <{level = 10 : i32, message = "qd,kd->qk"}> : () -> ()
    %cst_37 = arith.constant dense<0.000000e+00> : vector<8x8xf32>
    %81 = tpu.matmul %76, %78, %cst_37 {dimension_numbers = #tpu.dot_dimension_numbers<[1], [1], [0], [0], [0, 0, 1, 0], [], []>} : vector<8x8xbf16>, vector<8x8xbf16>, vector<8x8xf32> -> vector<8x8xf32>
    "tpu.trace_stop"() : () -> ()
    %cst_38 = arith.constant 0.353553385 : f32
    %82 = vector.broadcast %cst_38 : f32 to vector<8x8xf32>
    %83 = arith.mulf %81, %82 : vector<8x8xf32>
    %cst_39 = arith.constant 5.000000e-01 : f32
    %84 = vector.broadcast %cst_39 : f32 to vector<8x8xf32>
    %85 = arith.cmpf ogt, %24, %84 : vector<8x8xf32>
    %cst_40 = arith.constant -1.000000e+30 : f32
    %86 = vector.broadcast %cst_40 : f32 to vector<8x8xf32>
    %87 = arith.select %85, %86, %83 : vector<8x8xi1>, vector<8x8xf32>
    %cst_41 = arith.constant dense<0xFF800000> : vector<8xf32>
    %88 = vector.multi_reduction <maximumf>, %87, %cst_41 [1] : vector<8x8xf32> to vector<8xf32>
    %89 = vector.shape_cast %88 : vector<8xf32> to vector<8x1xf32>
    %90 = vector.broadcast %89 : vector<8x1xf32> to vector<8x8xf32>
    %91 = arith.subf %87, %90 : vector<8x8xf32>
    %92 = math.exp %91 : vector<8x8xf32>
    %cst_42 = arith.constant dense<0.000000e+00> : vector<8xf32>
    %93 = vector.multi_reduction <add>, %92, %cst_42 [1] : vector<8x8xf32> to vector<8xf32>
    %94 = vector.shape_cast %93 : vector<8xf32> to vector<8x1xf32>
    %95 = tpu.reciprocal %94 {approx = true} : vector<8x1xf32> -> vector<8x1xf32>
    %96 = vector.broadcast %95 : vector<8x1xf32> to vector<8x8xf32>
    %97 = arith.mulf %92, %96 : vector<8x8xf32>
    %98 = arith.truncf %97 : vector<8x8xf32> to vector<8x8xbf16>
    %cst_43 = arith.constant dense<0.000000e+00> : vector<8x8xf32>
    %99 = tpu.matmul %98, %80, %cst_43 {dimension_numbers = #tpu.dot_dimension_numbers<[1], [0], [0], [1], [0, 0, 1, 1], [], []>} : vector<8x8xbf16>, vector<8x8xbf16>, vector<8x8xf32> -> vector<8x8xf32>
    %100 = vector.extract_strided_slice %22 {offsets = [0, 24], sizes = [8, 8], strides = [1, 1]} : vector<8x96xf32> to vector<8x8xf32>
    %101 = arith.truncf %100 : vector<8x8xf32> to vector<8x8xbf16>
    %102 = vector.extract_strided_slice %22 {offsets = [0, 56], sizes = [8, 8], strides = [1, 1]} : vector<8x96xf32> to vector<8x8xf32>
    %103 = arith.truncf %102 : vector<8x8xf32> to vector<8x8xbf16>
    %104 = vector.extract_strided_slice %22 {offsets = [0, 88], sizes = [8, 8], strides = [1, 1]} : vector<8x96xf32> to vector<8x8xf32>
    %105 = arith.truncf %104 : vector<8x8xf32> to vector<8x8xbf16>
    "tpu.trace_start"() <{level = 10 : i32, message = "qd,kd->qk"}> : () -> ()
    %cst_44 = arith.constant dense<0.000000e+00> : vector<8x8xf32>
    %106 = tpu.matmul %101, %103, %cst_44 {dimension_numbers = #tpu.dot_dimension_numbers<[1], [1], [0], [0], [0, 0, 1, 0], [], []>} : vector<8x8xbf16>, vector<8x8xbf16>, vector<8x8xf32> -> vector<8x8xf32>
    "tpu.trace_stop"() : () -> ()
    %cst_45 = arith.constant 0.353553385 : f32
    %107 = vector.broadcast %cst_45 : f32 to vector<8x8xf32>
    %108 = arith.mulf %106, %107 : vector<8x8xf32>
    %cst_46 = arith.constant 5.000000e-01 : f32
    %109 = vector.broadcast %cst_46 : f32 to vector<8x8xf32>
    %110 = arith.cmpf ogt, %24, %109 : vector<8x8xf32>
    %cst_47 = arith.constant -1.000000e+30 : f32
    %111 = vector.broadcast %cst_47 : f32 to vector<8x8xf32>
    %112 = arith.select %110, %111, %108 : vector<8x8xi1>, vector<8x8xf32>
    %cst_48 = arith.constant dense<0xFF800000> : vector<8xf32>
    %113 = vector.multi_reduction <maximumf>, %112, %cst_48 [1] : vector<8x8xf32> to vector<8xf32>
    %114 = vector.shape_cast %113 : vector<8xf32> to vector<8x1xf32>
    %115 = vector.broadcast %114 : vector<8x1xf32> to vector<8x8xf32>
    %116 = arith.subf %112, %115 : vector<8x8xf32>
    %117 = math.exp %116 : vector<8x8xf32>
    %cst_49 = arith.constant dense<0.000000e+00> : vector<8xf32>
    %118 = vector.multi_reduction <add>, %117, %cst_49 [1] : vector<8x8xf32> to vector<8xf32>
    %119 = vector.shape_cast %118 : vector<8xf32> to vector<8x1xf32>
    %120 = tpu.reciprocal %119 {approx = true} : vector<8x1xf32> -> vector<8x1xf32>
    %121 = vector.broadcast %120 : vector<8x1xf32> to vector<8x8xf32>
    %122 = arith.mulf %117, %121 : vector<8x8xf32>
    %123 = arith.truncf %122 : vector<8x8xf32> to vector<8x8xbf16>
    %cst_50 = arith.constant dense<0.000000e+00> : vector<8x8xf32>
    %124 = tpu.matmul %123, %105, %cst_50 {dimension_numbers = #tpu.dot_dimension_numbers<[1], [0], [0], [1], [0, 0, 1, 1], [], []>} : vector<8x8xbf16>, vector<8x8xbf16>, vector<8x8xf32> -> vector<8x8xf32>
    %125 = tpu.concatenate %49, %74, %99, %124 in 1 : vector<8x8xf32>, vector<8x8xf32>, vector<8x8xf32>, vector<8x8xf32> -> vector<8x32xf32>
    %126 = arith.truncf %125 : vector<8x32xf32> to vector<8x32xbf16>
    %cst_51 = arith.constant dense<0.000000e+00> : vector<8x32xf32>
    %127 = tpu.matmul %126, %13, %cst_51 {dimension_numbers = #tpu.dot_dimension_numbers<[1], [0], [0], [1], [0, 0, 1, 1], [], []>} : vector<8x32xbf16>, vector<32x32xbf16>, vector<8x32xf32> -> vector<8x32xf32>
    %128 = vector.broadcast %2 : vector<1x32xf32> to vector<8x32xf32>
    %129 = arith.addf %127, %128 : vector<8x32xf32>
    %130 = arith.addf %18, %129 : vector<8x32xf32>
    %cst_52 = arith.constant dense<0.000000e+00> : vector<8xf32>
    %131 = vector.multi_reduction <add>, %130, %cst_52 [1] : vector<8x32xf32> to vector<8xf32>
    %132 = vector.shape_cast %131 : vector<8xf32> to vector<8x1xf32>
    %cst_53 = arith.constant 3.200000e+01 : f32
    %133 = vector.broadcast %cst_53 : f32 to vector<8x1xf32>
    %134 = arith.divf %132, %133 : vector<8x1xf32>
    %135 = vector.broadcast %134 : vector<8x1xf32> to vector<8x32xf32>
    %136 = arith.subf %130, %135 : vector<8x32xf32>
    %137 = arith.mulf %136, %136 : vector<8x32xf32>
    %cst_54 = arith.constant dense<0.000000e+00> : vector<8xf32>
    %138 = vector.multi_reduction <add>, %137, %cst_54 [1] : vector<8x32xf32> to vector<8xf32>
    %139 = vector.shape_cast %138 : vector<8xf32> to vector<8x1xf32>
    %cst_55 = arith.constant 3.200000e+01 : f32
    %140 = vector.broadcast %cst_55 : f32 to vector<8x1xf32>
    %141 = arith.divf %139, %140 : vector<8x1xf32>
    %142 = vector.broadcast %134 : vector<8x1xf32> to vector<8x32xf32>
    %143 = arith.subf %130, %142 : vector<8x32xf32>
    %cst_56 = arith.constant 9.99999974E-6 : f32
    %144 = vector.broadcast %cst_56 : f32 to vector<8x1xf32>
    %145 = arith.addf %141, %144 : vector<8x1xf32>
    %146 = math.rsqrt %145 : vector<8x1xf32>
    %147 = vector.broadcast %146 : vector<8x1xf32> to vector<8x32xf32>
    %148 = arith.mulf %143, %147 : vector<8x32xf32>
    %149 = vector.broadcast %3 : vector<1x32xf32> to vector<8x32xf32>
    %150 = arith.mulf %148, %149 : vector<8x32xf32>
    %151 = vector.broadcast %4 : vector<1x32xf32> to vector<8x32xf32>
    %152 = arith.addf %150, %151 : vector<8x32xf32>
    %153 = arith.truncf %152 : vector<8x32xf32> to vector<8x32xbf16>
    %cst_57 = arith.constant dense<0.000000e+00> : vector<8x64xf32>
    %154 = tpu.matmul %153, %12, %cst_57 {dimension_numbers = #tpu.dot_dimension_numbers<[1], [0], [0], [1], [0, 0, 1, 1], [], []>} : vector<8x32xbf16>, vector<32x64xbf16>, vector<8x64xf32> -> vector<8x64xf32>
    %155 = vector.broadcast %5 : vector<1x64xf32> to vector<8x64xf32>
    %156 = arith.addf %154, %155 : vector<8x64xf32>
    %cst_58 = arith.constant 0.000000e+00 : f32
    %157 = vector.broadcast %cst_58 : f32 to vector<8x64xf32>
    %158 = arith.maximumf %156, %157 : vector<8x64xf32>
    %159 = arith.truncf %158 : vector<8x64xf32> to vector<8x64xbf16>
    %c0_59 = arith.constant 0 : index
    %c0_60 = arith.constant 0 : index
    %160 = vector.load %arg6[%c0_59, %c0_60] : memref<64x32xbf16, #tpu.memory_space<vmem>>, vector<64x32xbf16>
    %cst_61 = arith.constant dense<0.000000e+00> : vector<8x32xf32>
    %161 = tpu.matmul %159, %160, %cst_61 {dimension_numbers = #tpu.dot_dimension_numbers<[1], [0], [0], [1], [0, 0, 1, 1], [], []>} : vector<8x64xbf16>, vector<64x32xbf16>, vector<8x32xf32> -> vector<8x32xf32>
    %162 = vector.broadcast %6 : vector<1x32xf32> to vector<8x32xf32>
    %163 = arith.addf %161, %162 : vector<8x32xf32>
    %164 = arith.addf %152, %163 : vector<8x32xf32>
    %cst_62 = arith.constant dense<0.000000e+00> : vector<8xf32>
    %165 = vector.multi_reduction <add>, %164, %cst_62 [1] : vector<8x32xf32> to vector<8xf32>
    %166 = vector.shape_cast %165 : vector<8xf32> to vector<8x1xf32>
    %cst_63 = arith.constant 3.200000e+01 : f32
    %167 = vector.broadcast %cst_63 : f32 to vector<8x1xf32>
    %168 = arith.divf %166, %167 : vector<8x1xf32>
    %169 = vector.broadcast %168 : vector<8x1xf32> to vector<8x32xf32>
    %170 = arith.subf %164, %169 : vector<8x32xf32>
    %171 = arith.mulf %170, %170 : vector<8x32xf32>
    %cst_64 = arith.constant dense<0.000000e+00> : vector<8xf32>
    %172 = vector.multi_reduction <add>, %171, %cst_64 [1] : vector<8x32xf32> to vector<8xf32>
    %173 = vector.shape_cast %172 : vector<8xf32> to vector<8x1xf32>
    %cst_65 = arith.constant 3.200000e+01 : f32
    %174 = vector.broadcast %cst_65 : f32 to vector<8x1xf32>
    %175 = arith.divf %173, %174 : vector<8x1xf32>
    %176 = vector.broadcast %168 : vector<8x1xf32> to vector<8x32xf32>
    %177 = arith.subf %164, %176 : vector<8x32xf32>
    %cst_66 = arith.constant 9.99999974E-6 : f32
    %178 = vector.broadcast %cst_66 : f32 to vector<8x1xf32>
    %179 = arith.addf %175, %178 : vector<8x1xf32>
    %180 = math.rsqrt %179 : vector<8x1xf32>
    %181 = vector.broadcast %180 : vector<8x1xf32> to vector<8x32xf32>
    %182 = arith.mulf %177, %181 : vector<8x32xf32>
    %183 = vector.broadcast %7 : vector<1x32xf32> to vector<8x32xf32>
    %184 = arith.mulf %182, %183 : vector<8x32xf32>
    %185 = vector.broadcast %8 : vector<1x32xf32> to vector<8x32xf32>
    %186 = arith.addf %184, %185 : vector<8x32xf32>
    %187 = arith.truncf %186 : vector<8x32xf32> to vector<8x32xbf16>
    %cst_67 = arith.constant dense<0.000000e+00> : vector<8x96xf32>
    %188 = tpu.matmul %187, %11, %cst_67 {dimension_numbers = #tpu.dot_dimension_numbers<[1], [0], [0], [1], [0, 0, 1, 1], [], []>} : vector<8x32xbf16>, vector<32x96xbf16>, vector<8x96xf32> -> vector<8x96xf32>
    %189 = vector.broadcast %9 : vector<1x96xf32> to vector<8x96xf32>
    %190 = arith.addf %188, %189 : vector<8x96xf32>
    %191 = arith.truncf %190 : vector<8x96xf32> to vector<8x96xbf16>
    %c0_68 = arith.constant 0 : index
    %c0_69 = arith.constant 0 : index
    %192 = vector.load %arg7[%c0_68, %c0_69] : memref<96x256xbf16, #tpu.memory_space<vmem>>, vector<96x256xbf16>
    %cst_70 = arith.constant dense<0.000000e+00> : vector<8x256xf32>
    %193 = tpu.matmul %191, %192, %cst_70 {dimension_numbers = #tpu.dot_dimension_numbers<[1], [0], [0], [1], [0, 0, 1, 1], [], []>} : vector<8x96xbf16>, vector<96x256xbf16>, vector<8x256xf32> -> vector<8x256xf32>
    %c0_71 = arith.constant 0 : index
    %c0_72 = arith.constant 0 : index
    %194 = vector.load %arg9[%c0_71, %c0_72] : memref<8x256xf32, #tpu.memory_space<vmem>>, vector<8x256xf32>
    tpu.vector_store %arg9[%c0_71, %c0_72], %193 {strides = array<i32>} : memref<8x256xf32, #tpu.memory_space<vmem>>, vector<8x256xf32>,
    %c0_73 = arith.constant 0 : index
    %c0_74 = arith.constant 0 : index
    %195 = vector.load %arg3[%c0_73, %c0_74] : memref<8x256xf32, #tpu.memory_space<vmem>>, vector<8x256xf32>
    %cst_75 = arith.constant 0.000000e+00 : f32
    %196 = vector.broadcast %cst_75 : f32 to vector<1x1xf32>
    %cst_76 = arith.constant 0.000000e+00 : f32
    %197 = vector.broadcast %cst_76 : f32 to vector<1x1xf32>
    %198 = vector.extract_strided_slice %193 {offsets = [0, 0], sizes = [8, 64], strides = [1, 1]} : vector<8x256xf32> to vector<8x64xf32>
    %199 = vector.extract_strided_slice %195 {offsets = [0, 0], sizes = [8, 64], strides = [1, 1]} : vector<8x256xf32> to vector<8x64xf32>
    %cst_77 = arith.constant dense<0xFF800000> : vector<8xf32>
    %200 = vector.multi_reduction <maximumf>, %198, %cst_77 [1] : vector<8x64xf32> to vector<8xf32>
    %201 = vector.shape_cast %200 : vector<8xf32> to vector<8x1xf32>
    %202 = vector.broadcast %201 : vector<8x1xf32> to vector<8x64xf32>
    %203 = arith.subf %198, %202 : vector<8x64xf32>
    %204 = math.exp %203 : vector<8x64xf32>
    %cst_78 = arith.constant dense<0.000000e+00> : vector<8xf32>
    %205 = vector.multi_reduction <add>, %204, %cst_78 [1] : vector<8x64xf32> to vector<8xf32>
    %206 = vector.shape_cast %205 : vector<8xf32> to vector<8x1xf32>
    %207 = math.log %206 : vector<8x1xf32>
    %208 = arith.addf %201, %207 : vector<8x1xf32>
    %209 = arith.mulf %199, %198 : vector<8x64xf32>
    %cst_79 = arith.constant dense<0.000000e+00> : vector<8xf32>
    %210 = vector.multi_reduction <add>, %209, %cst_79 [1] : vector<8x64xf32> to vector<8xf32>
    %211 = vector.shape_cast %210 : vector<8xf32> to vector<8x1xf32>
    %cst_80 = arith.constant dense<0.000000e+00> : vector<8xf32>
    %212 = vector.multi_reduction <add>, %199, %cst_80 [1] : vector<8x64xf32> to vector<8xf32>
    %213 = vector.shape_cast %212 : vector<8xf32> to vector<8x1xf32>
    %214 = arith.subf %208, %211 : vector<8x1xf32>
    %215 = arith.mulf %213, %214 : vector<8x1xf32>
    %216 = vector.shape_cast %215 : vector<8x1xf32> to vector<1x8x1xf32>
    %cst_81 = arith.constant dense<0.000000e+00> : vector<1xf32>
    %217 = vector.multi_reduction <add>, %216, %cst_81 [1, 2] : vector<1x8x1xf32> to vector<1xf32>
    %218 = vector.shape_cast %217 : vector<1xf32> to vector<1x1x1xf32>
    %219 = vector.extract %218[0, 0, 0] : f32 from vector<1x1x1xf32>
    %220 = vector.broadcast %219 : f32 to vector<1x1xf32>
    %221 = arith.addf %196, %220 : vector<1x1xf32>
    %222 = vector.shape_cast %213 : vector<8x1xf32> to vector<1x8x1xf32>
    %cst_82 = arith.constant dense<0.000000e+00> : vector<1xf32>
    %223 = vector.multi_reduction <add>, %222, %cst_82 [1, 2] : vector<1x8x1xf32> to vector<1xf32>
    %224 = vector.shape_cast %223 : vector<1xf32> to vector<1x1x1xf32>
    %225 = vector.extract %224[0, 0, 0] : f32 from vector<1x1x1xf32>
    %226 = vector.broadcast %225 : f32 to vector<1x1xf32>
    %227 = arith.addf %197, %226 : vector<1x1xf32>
    %228 = vector.extract_strided_slice %193 {offsets = [0, 64], sizes = [8, 64], strides = [1, 1]} : vector<8x256xf32> to vector<8x64xf32>
    %229 = vector.extract_strided_slice %195 {offsets = [0, 64], sizes = [8, 64], strides = [1, 1]} : vector<8x256xf32> to vector<8x64xf32>
    %cst_83 = arith.constant dense<0xFF800000> : vector<8xf32>
    %230 = vector.multi_reduction <maximumf>, %228, %cst_83 [1] : vector<8x64xf32> to vector<8xf32>
    %231 = vector.shape_cast %230 : vector<8xf32> to vector<8x1xf32>
    %232 = vector.broadcast %231 : vector<8x1xf32> to vector<8x64xf32>
    %233 = arith.subf %228, %232 : vector<8x64xf32>
    %234 = math.exp %233 : vector<8x64xf32>
    %cst_84 = arith.constant dense<0.000000e+00> : vector<8xf32>
    %235 = vector.multi_reduction <add>, %234, %cst_84 [1] : vector<8x64xf32> to vector<8xf32>
    %236 = vector.shape_cast %235 : vector<8xf32> to vector<8x1xf32>
    %237 = math.log %236 : vector<8x1xf32>
    %238 = arith.addf %231, %237 : vector<8x1xf32>
    %239 = arith.mulf %229, %228 : vector<8x64xf32>
    %cst_85 = arith.constant dense<0.000000e+00> : vector<8xf32>
    %240 = vector.multi_reduction <add>, %239, %cst_85 [1] : vector<8x64xf32> to vector<8xf32>
    %241 = vector.shape_cast %240 : vector<8xf32> to vector<8x1xf32>
    %cst_86 = arith.constant dense<0.000000e+00> : vector<8xf32>
    %242 = vector.multi_reduction <add>, %229, %cst_86 [1] : vector<8x64xf32> to vector<8xf32>
    %243 = vector.shape_cast %242 : vector<8xf32> to vector<8x1xf32>
    %244 = arith.subf %238, %241 : vector<8x1xf32>
    %245 = arith.mulf %243, %244 : vector<8x1xf32>
    %246 = vector.shape_cast %245 : vector<8x1xf32> to vector<1x8x1xf32>
    %cst_87 = arith.constant dense<0.000000e+00> : vector<1xf32>
    %247 = vector.multi_reduction <add>, %246, %cst_87 [1, 2] : vector<1x8x1xf32> to vector<1xf32>
    %248 = vector.shape_cast %247 : vector<1xf32> to vector<1x1x1xf32>
    %249 = vector.extract %248[0, 0, 0] : f32 from vector<1x1x1xf32>
    %250 = vector.broadcast %249 : f32 to vector<1x1xf32>
    %251 = arith.addf %221, %250 : vector<1x1xf32>
    %252 = vector.shape_cast %243 : vector<8x1xf32> to vector<1x8x1xf32>
    %cst_88 = arith.constant dense<0.000000e+00> : vector<1xf32>
    %253 = vector.multi_reduction <add>, %252, %cst_88 [1, 2] : vector<1x8x1xf32> to vector<1xf32>
    %254 = vector.shape_cast %253 : vector<1xf32> to vector<1x1x1xf32>
    %255 = vector.extract %254[0, 0, 0] : f32 from vector<1x1x1xf32>
    %256 = vector.broadcast %255 : f32 to vector<1x1xf32>
    %257 = arith.addf %227, %256 : vector<1x1xf32>
    %258 = vector.extract_strided_slice %193 {offsets = [0, 128], sizes = [8, 64], strides = [1, 1]} : vector<8x256xf32> to vector<8x64xf32>
    %259 = vector.extract_strided_slice %195 {offsets = [0, 128], sizes = [8, 64], strides = [1, 1]} : vector<8x256xf32> to vector<8x64xf32>
    %cst_89 = arith.constant dense<0xFF800000> : vector<8xf32>
    %260 = vector.multi_reduction <maximumf>, %258, %cst_89 [1] : vector<8x64xf32> to vector<8xf32>
    %261 = vector.shape_cast %260 : vector<8xf32> to vector<8x1xf32>
    %262 = vector.broadcast %261 : vector<8x1xf32> to vector<8x64xf32>
    %263 = arith.subf %258, %262 : vector<8x64xf32>
    %264 = math.exp %263 : vector<8x64xf32>
    %cst_90 = arith.constant dense<0.000000e+00> : vector<8xf32>
    %265 = vector.multi_reduction <add>, %264, %cst_90 [1] : vector<8x64xf32> to vector<8xf32>
    %266 = vector.shape_cast %265 : vector<8xf32> to vector<8x1xf32>
    %267 = math.log %266 : vector<8x1xf32>
    %268 = arith.addf %261, %267 : vector<8x1xf32>
    %269 = arith.mulf %259, %258 : vector<8x64xf32>
    %cst_91 = arith.constant dense<0.000000e+00> : vector<8xf32>
    %270 = vector.multi_reduction <add>, %269, %cst_91 [1] : vector<8x64xf32> to vector<8xf32>
    %271 = vector.shape_cast %270 : vector<8xf32> to vector<8x1xf32>
    %cst_92 = arith.constant dense<0.000000e+00> : vector<8xf32>
    %272 = vector.multi_reduction <add>, %259, %cst_92 [1] : vector<8x64xf32> to vector<8xf32>
    %273 = vector.shape_cast %272 : vector<8xf32> to vector<8x1xf32>
    %274 = arith.subf %268, %271 : vector<8x1xf32>
    %275 = arith.mulf %273, %274 : vector<8x1xf32>
    %276 = vector.shape_cast %275 : vector<8x1xf32> to vector<1x8x1xf32>
    %cst_93 = arith.constant dense<0.000000e+00> : vector<1xf32>
    %277 = vector.multi_reduction <add>, %276, %cst_93 [1, 2] : vector<1x8x1xf32> to vector<1xf32>
    %278 = vector.shape_cast %277 : vector<1xf32> to vector<1x1x1xf32>
    %279 = vector.extract %278[0, 0, 0] : f32 from vector<1x1x1xf32>
    %280 = vector.broadcast %279 : f32 to vector<1x1xf32>
    %281 = arith.addf %251, %280 : vector<1x1xf32>
    %282 = vector.shape_cast %273 : vector<8x1xf32> to vector<1x8x1xf32>
    %cst_94 = arith.constant dense<0.000000e+00> : vector<1xf32>
    %283 = vector.multi_reduction <add>, %282, %cst_94 [1, 2] : vector<1x8x1xf32> to vector<1xf32>
    %284 = vector.shape_cast %283 : vector<1xf32> to vector<1x1x1xf32>
    %285 = vector.extract %284[0, 0, 0] : f32 from vector<1x1x1xf32>
    %286 = vector.broadcast %285 : f32 to vector<1x1xf32>
    %287 = arith.addf %257, %286 : vector<1x1xf32>
    %288 = tpu.iota {dimensions = array<i32: 1>} : vector<1x128xi32>
    %c0_i32 = arith.constant 0 : i32
    %289 = vector.broadcast %c0_i32 : i32 to vector<1x128xi32>
    %290 = arith.cmpi eq, %288, %289 : vector<1x128xi32>
    %cst_95 = arith.constant 0.000000e+00 : f32
    %291 = vector.shape_cast %281 : vector<1x1xf32> to vector<1x1xf32>
    %292 = vector.broadcast %291 : vector<1x1xf32> to vector<1x128xf32>
    %293 = vector.broadcast %cst_95 : f32 to vector<1x128xf32>
    %294 = arith.select %290, %292, %293 : vector<1x128xi1>, vector<1x128xf32>
    %c1_i32 = arith.constant 1 : i32
    %295 = vector.broadcast %c1_i32 : i32 to vector<1x128xi32>
    %296 = arith.cmpi eq, %288, %295 : vector<1x128xi32>
    %cst_96 = arith.constant 0.000000e+00 : f32
    %297 = vector.shape_cast %287 : vector<1x1xf32> to vector<1x1xf32>
    %298 = vector.broadcast %297 : vector<1x1xf32> to vector<1x128xf32>
    %299 = vector.broadcast %cst_96 : f32 to vector<1x128xf32>
    %300 = arith.select %296, %298, %299 : vector<1x128xi1>, vector<1x128xf32>
    %301 = arith.addf %294, %300 : vector<1x128xf32>
    %c0_97 = arith.constant 0 : index
    %c0_98 = arith.constant 0 : index
    %c0_99 = arith.constant 0 : index
    %302 = vector.load %arg10[%c0_97, %c0_98, %c0_99] : memref<1x1x128xf32, #tpu.memory_space<vmem>>, vector<1x1x128xf32>
    %303 = vector.shape_cast %302 : vector<1x1x128xf32> to vector<1x128xf32>
    %304 = vector.shape_cast %301 : vector<1x128xf32> to vector<1x1x128xf32>
    tpu.vector_store %arg10[%c0_97, %c0_98, %c0_99], %304 {strides = array<i32>} : memref<1x1x128xf32, #tpu.memory_space<vmem>>, vector<1x1x128xf32>,
    return
  }
  func.func @transform_0(%arg0: i32) -> (i32, i32) {
    %c0_i32 = arith.constant 0 : i32
    %c0_i32_0 = arith.constant 0 : i32
    return %arg0, %c0_i32 : i32, i32
  }
  func.func @transform_1(%arg0: i32) -> (i32, i32, i32) {
    %c0_i32 = arith.constant 0 : i32
    %c0_i32_0 = arith.constant 0 : i32
    %c0_i32_1 = arith.constant 0 : i32
    return %arg0, %c0_i32, %c0_i32_0 : i32, i32, i32
  }
  func.func @transform_2(%arg0: i32) -> (i32, i32) {
    %c0_i32 = arith.constant 0 : i32
    %c0_i32_0 = arith.constant 0 : i32
    return %arg0, %c0_i32 : i32, i32
  }
  func.func @transform_3(%arg0: i32) -> (i32, i32) {
    %c0_i32 = arith.constant 0 : i32
    %c0_i32_0 = arith.constant 0 : i32
    %c0_i32_1 = arith.constant 0 : i32
    return %c0_i32, %c0_i32_0 : i32, i32
  }
  func.func @transform_4(%arg0: i32) -> (i32, i32) {
    %c0_i32 = arith.constant 0 : i32
    %c0_i32_0 = arith.constant 0 : i32
    %c0_i32_1 = arith.constant 0 : i32
    return %c0_i32, %c0_i32_0 : i32, i32
  }
  func.func @transform_5(%arg0: i32) -> (i32, i32) {
    %c0_i32 = arith.constant 0 : i32
    %c0_i32_0 = arith.constant 0 : i32
    %c0_i32_1 = arith.constant 0 : i32
    return %c0_i32, %c0_i32_0 : i32, i32
  }
  func.func @transform_6(%arg0: i32) -> (i32, i32) {
    %c0_i32 = arith.constant 0 : i32
    %c0_i32_0 = arith.constant 0 : i32
    %c0_i32_1 = arith.constant 0 : i32
    return %c0_i32, %c0_i32_0 : i32, i32
  }
  func.func @transform_7(%arg0: i32) -> (i32, i32) {
    %c0_i32 = arith.constant 0 : i32
    %c0_i32_0 = arith.constant 0 : i32
    %c0_i32_1 = arith.constant 0 : i32
    return %c0_i32, %c0_i32_0 : i32, i32
  }
  func.func @transform_8(%arg0: i32) -> (i32, i32) {
    %c0_i32 = arith.constant 0 : i32
    %c0_i32_0 = arith.constant 0 : i32
    return %arg0, %c0_i32 : i32, i32
  }
  func.func @transform_9(%arg0: i32) -> (i32, i32, i32) {
    %c0_i32 = arith.constant 0 : i32
    %c0_i32_0 = arith.constant 0 : i32
    %c0_i32_1 = arith.constant 0 : i32
    return %arg0, %c0_i32, %c0_i32_0 : i32, i32, i32
  }
}

</mosaic_0001>

<llo_original>
// kernel: transformer_language_model_forward.1
$region0: #{transformer_language_model_forward.1}
  #allocation0 [shape = 'u32[]', space=smem, size = 0x4, offset = 0x4, fixed_abs, tag = 'smem constant byte address 0x4 - core index']
  #allocation1 [shape = 'u32[144,128]{1,0:T(1,128)}', space=vmem, size = 0x12000, scoped, tag = 'internal scratch']
  %s0 = inlined_call_operand.vmem [shape: bf16[16,160], index: 0, kind: input, shape index: {}]
  %s1 = inlined_call_operand.vmem [shape: f32[2,8,8], index: 1, kind: input, shape index: {}]
  %s2 = inlined_call_operand.vmem [shape: f32[16,256], index: 2, kind: input, shape index: {}]
  %s3 = inlined_call_operand.vmem [shape: bf16[160,32], index: 3, kind: input, shape index: {}]
  %s4 = inlined_call_operand.vmem [shape: bf16[32,384], index: 4, kind: input, shape index: {}]
  %s5 = inlined_call_operand.vmem [shape: bf16[64,32], index: 5, kind: input, shape index: {}]
  %s6 = inlined_call_operand.vmem [shape: bf16[96,256], index: 6, kind: input, shape index: {}]
  %s7 = inlined_call_operand.vmem [shape: f32[16,128], index: 7, kind: input, shape index: {}]
  %s8 = inlined_call_operand.vmem [shape: f32[16,256], index: 8, kind: output, shape index: {0}]
  %s9 = inlined_call_operand.vmem [shape: f32[2,1,128], index: 9, kind: output, shape index: {1}]
  %10 = xla_tuple %s8, %s9
  %s11 = sld [smem:[#allocation0]]
  $region73: #{transformer_language_model_forward.1} parent=0
    _
  %s13 = ssub.s32 1, %s11
  %s14 = scalar_select 0, %s13, %s11
  loop: start=0, step=1, limit=4
  $region2: #{transformer_language_model_forward.1} parent=0 // loop_pre_header
    _
  $region3: #{transformer_language_model_forward.1} parent=0 // loop_header
    %s16 = sphi 0, %s20
    %p17 = scmp.ge.s32.totalorder %s16, 4
    %s26 = sphi 0, %s28
    %s29 = sphi 0, %s26
    %s30 = sphi 0, %s29
    %s46 = sphi 0, %s30
    %s52 = sphi 0, %s54
    %s55 = sphi 0, %s52
    %s56 = sphi 0, %s55
    %s72 = sphi 0, %s56
    %s78 = sphi 0, %s80
    %s81 = sphi 0, %s78
    %s82 = sphi 0, %s81
    %s98 = sphi 0, %s82
    %s102 = sphi 0, %s102
    %s104 = sphi 0, %s102
    %s105 = sphi 0, %s104
    %s119 = sphi 0, %s105
    %s123 = sphi 0, %s123
    %s125 = sphi 0, %s123
    %s126 = sphi 0, %s125
    %s140 = sphi 0, %s126
    %s144 = sphi 0, %s144
    %s146 = sphi 0, %s144
    %s147 = sphi 0, %s146
    %s161 = sphi 0, %s147
    %s165 = sphi 0, %s165
    %s167 = sphi 0, %s165
    %s168 = sphi 0, %s167
    %s182 = sphi 0, %s168
    %s186 = sphi 0, %s186
    %s188 = sphi 0, %s186
    %s189 = sphi 0, %s188
    %s203 = sphi 0, %s189
    %s209 = sphi 0, %s211
    %s212 = sphi 0, %s209
    %s213 = sphi 0, %s212
    %s229 = sphi 0, %s213
    %s235 = sphi 0, %s237
    %s238 = sphi 0, %s235
    %s239 = sphi 0, %s238
    %s255 = sphi 0, %s239
  $region4: #{transformer_language_model_forward.1} parent=0 // loop_header_branch
    %19 = sbr.rel (%p17) target = $region8
  $region5: #{transformer_language_model_forward.1} parent=0 // loop_body
    %s21 = ssub.s32 %s16, 1
    %s22 = ssub.s32 %s16, 2
    %s23 = sadd.s32 %s16, 1
    %s24 = ssub.s32 %s16, %s23
    %p25 = scmp.eq.s32.totalorder %s24, 0
    %s27 = sadd.s32 %s26, 1
    %s28 = scalar_select %p25, %s26, %s27
    %p31 = pneg %p25
    %p32 = scmp.eq.s32.totalorder %s16, 1
    %p33 = por %p31, %p32
    %p34 = scmp.ne.s32.totalorder %s26, %s29
    %p35 = scmp.eq.s32.totalorder %s16, 0
    %p36 = por %p34, %p35
    %p37 = scmp.ne.s32.totalorder %s26, %s29
    %p38 = scmp.eq.s32.totalorder %s21, 1
    %p39 = por %p37, %p38
    %p40 = scmp.ne.s32.totalorder %s29, %s30
    %p41 = scmp.eq.s32.totalorder %s21, 0
    %p42 = por %p40, %p41
    %p43 = scmp.ne.s32.totalorder %s29, %s30
    %p44 = scmp.eq.s32.totalorder %s22, 1
    %p45 = por %p43, %p44
    %p47 = scmp.ne.s32.totalorder %s30, %s46
    %p48 = scmp.eq.s32.totalorder %s22, 0
    %p49 = por %p47, %p48
    %s50 = ssub.s32 %s16, %s23
    %p51 = scmp.eq.s32.totalorder %s50, 0
    %s53 = sadd.s32 %s52, 1
    %s54 = scalar_select %p51, %s52, %s53
    %p57 = pneg %p51
    %p58 = scmp.eq.s32.totalorder %s16, 1
    %p59 = por %p57, %p58
    %p60 = scmp.ne.s32.totalorder %s52, %s55
    %p61 = scmp.eq.s32.totalorder %s16, 0
    %p62 = por %p60, %p61
    %p63 = scmp.ne.s32.totalorder %s52, %s55
    %p64 = scmp.eq.s32.totalorder %s21, 1
    %p65 = por %p63, %p64
    %p66 = scmp.ne.s32.totalorder %s55, %s56
    %p67 = scmp.eq.s32.totalorder %s21, 0
    %p68 = por %p66, %p67
    %p69 = scmp.ne.s32.totalorder %s55, %s56
    %p70 = scmp.eq.s32.totalorder %s22, 1
    %p71 = por %p69, %p70
    %p73 = scmp.ne.s32.totalorder %s56, %s72
    %p74 = scmp.eq.s32.totalorder %s22, 0
    %p75 = por %p73, %p74
    %s76 = ssub.s32 %s16, %s23
    %p77 = scmp.eq.s32.totalorder %s76, 0
    %s79 = sadd.s32 %s78, 1
    %s80 = scalar_select %p77, %s78, %s79
    %p83 = pneg %p77
    %p84 = scmp.eq.s32.totalorder %s16, 1
    %p85 = por %p83, %p84
    %p86 = scmp.ne.s32.totalorder %s78, %s81
    %p87 = scmp.eq.s32.totalorder %s16, 0
    %p88 = por %p86, %p87
    %p89 = scmp.ne.s32.totalorder %s78, %s81
    %p90 = scmp.eq.s32.totalorder %s21, 1
    %p91 = por %p89, %p90
    %p92 = scmp.ne.s32.totalorder %s81, %s82
    %p93 = scmp.eq.s32.totalorder %s21, 0
    %p94 = por %p92, %p93
    %p95 = scmp.ne.s32.totalorder %s81, %s82
    %p96 = scmp.eq.s32.totalorder %s22, 1
    %p97 = por %p95, %p96
    %p99 = scmp.ne.s32.totalorder %s82, %s98
    %p100 = scmp.eq.s32.totalorder %s22, 0
    %p101 = por %p99, %p100
    %s103 = sadd.s32 %s102, 1
    %p106 = scmp.eq.s32.totalorder %s16, 1
    %p107 = scmp.ne.s32.totalorder %s102, %s104
    %p108 = scmp.eq.s32.totalorder %s16, 0
    %p109 = por %p107, %p108
    %p110 = scmp.ne.s32.totalorder %s102, %s104
    %p111 = scmp.eq.s32.totalorder %s21, 1
    %p112 = por %p110, %p111
    %p113 = scmp.ne.s32.totalorder %s104, %s105
    %p114 = scmp.eq.s32.totalorder %s21, 0
    %p115 = por %p113, %p114
    %p116 = scmp.ne.s32.totalorder %s104, %s105
    %p117 = scmp.eq.s32.totalorder %s22, 1
    %p118 = por %p116, %p117
    %p120 = scmp.ne.s32.totalorder %s105, %s119
    %p121 = scmp.eq.s32.totalorder %s22, 0
    %p122 = por %p120, %p121
    %s124 = sadd.s32 %s123, 1
    %p127 = scmp.eq.s32.totalorder %s16, 1
    %p128 = scmp.ne.s32.totalorder %s123, %s125
    %p129 = scmp.eq.s32.totalorder %s16, 0
    %p130 = por %p128, %p129
    %p131 = scmp.ne.s32.totalorder %s123, %s125
    %p132 = scmp.eq.s32.totalorder %s21, 1
    %p133 = por %p131, %p132
    %p134 = scmp.ne.s32.totalorder %s125, %s126
    %p135 = scmp.eq.s32.totalorder %s21, 0
    %p136 = por %p134, %p135
    %p137 = scmp.ne.s32.totalorder %s125, %s126
    %p138 = scmp.eq.s32.totalorder %s22, 1
    %p139 = por %p137, %p138
    %p141 = scmp.ne.s32.totalorder %s126, %s140
    %p142 = scmp.eq.s32.totalorder %s22, 0
    %p143 = por %p141, %p142
    %s145 = sadd.s32 %s144, 1
    %p148 = scmp.eq.s32.totalorder %s16, 1
    %p149 = scmp.ne.s32.totalorder %s144, %s146
    %p150 = scmp.eq.s32.totalorder %s16, 0
    %p151 = por %p149, %p150
    %p152 = scmp.ne.s32.totalorder %s144, %s146
    %p153 = scmp.eq.s32.totalorder %s21, 1
    %p154 = por %p152, %p153
    %p155 = scmp.ne.s32.totalorder %s146, %s147
    %p156 = scmp.eq.s32.totalorder %s21, 0
    %p157 = por %p155, %p156
    %p158 = scmp.ne.s32.totalorder %s146, %s147
    %p159 = scmp.eq.s32.totalorder %s22, 1
    %p160 = por %p158, %p159
    %p162 = scmp.ne.s32.totalorder %s147, %s161
    %p163 = scmp.eq.s32.totalorder %s22, 0
    %p164 = por %p162, %p163
    %s166 = sadd.s32 %s165, 1
    %p169 = scmp.eq.s32.totalorder %s16, 1
    %p170 = scmp.ne.s32.totalorder %s165, %s167
    %p171 = scmp.eq.s32.totalorder %s16, 0
    %p172 = por %p170, %p171
    %p173 = scmp.ne.s32.totalorder %s165, %s167
    %p174 = scmp.eq.s32.totalorder %s21, 1
    %p175 = por %p173, %p174
    %p176 = scmp.ne.s32.totalorder %s167, %s168
    %p177 = scmp.eq.s32.totalorder %s21, 0
    %p178 = por %p176, %p177
    %p179 = scmp.ne.s32.totalorder %s167, %s168
    %p180 = scmp.eq.s32.totalorder %s22, 1
    %p181 = por %p179, %p180
    %p183 = scmp.ne.s32.totalorder %s168, %s182
    %p184 = scmp.eq.s32.totalorder %s22, 0
    %p185 = por %p183, %p184
    %s187 = sadd.s32 %s186, 1
    %p190 = scmp.eq.s32.totalorder %s16, 1
    %p191 = scmp.ne.s32.totalorder %s186, %s188
    %p192 = scmp.eq.s32.totalorder %s16, 0
    %p193 = por %p191, %p192
    %p194 = scmp.ne.s32.totalorder %s186, %s188
    %p195 = scmp.eq.s32.totalorder %s21, 1
    %p196 = por %p194, %p195
    %p197 = scmp.ne.s32.totalorder %s188, %s189
    %p198 = scmp.eq.s32.totalorder %s21, 0
    %p199 = por %p197, %p198
    %p200 = scmp.ne.s32.totalorder %s188, %s189
    %p201 = scmp.eq.s32.totalorder %s22, 1
    %p202 = por %p200, %p201
    %p204 = scmp.ne.s32.totalorder %s189, %s203
    %p205 = scmp.eq.s32.totalorder %s22, 0
    %p206 = por %p204, %p205
    %s207 = ssub.s32 %s16, %s23
    %p208 = scmp.eq.s32.totalorder %s207, 0
    %s210 = sadd.s32 %s209, 1
    %s211 = scalar_select %p208, %s209, %s210
    %p214 = pneg %p208
    %p215 = scmp.eq.s32.totalorder %s16, 1
    %p216 = por %p214, %p215
    %p217 = scmp.ne.s32.totalorder %s209, %s212
    %p218 = scmp.eq.s32.totalorder %s16, 0
    %p219 = por %p217, %p218
    %p220 = scmp.ne.s32.totalorder %s209, %s212
    %p221 = scmp.eq.s32.totalorder %s21, 1
    %p222 = por %p220, %p221
    %p223 = scmp.ne.s32.totalorder %s212, %s213
    %p224 = scmp.eq.s32.totalorder %s21, 0
    %p225 = por %p223, %p224
    %p226 = scmp.ne.s32.totalorder %s212, %s213
    %p227 = scmp.eq.s32.totalorder %s22, 1
    %p228 = por %p226, %p227
    %p230 = scmp.ne.s32.totalorder %s213, %s229
    %p231 = scmp.eq.s32.totalorder %s22, 0
    %p232 = por %p230, %p231
    %s233 = ssub.s32 %s16, %s23
    %p234 = scmp.eq.s32.totalorder %s233, 0
    %s236 = sadd.s32 %s235, 1
    %s237 = scalar_select %p234, %s235, %s236
    %p240 = pneg %p234
    %p241 = scmp.eq.s32.totalorder %s16, 1
    %p242 = por %p240, %p241
    %p243 = scmp.ne.s32.totalorder %s235, %s238
    %p244 = scmp.eq.s32.totalorder %s16, 0
    %p245 = por %p243, %p244
    %p246 = scmp.ne.s32.totalorder %s235, %s238
    %p247 = scmp.eq.s32.totalorder %s21, 1
    %p248 = por %p246, %p247
    %p249 = scmp.ne.s32.totalorder %s238, %s239
    %p250 = scmp.eq.s32.totalorder %s21, 0
    %p251 = por %p249, %p250
    %p252 = scmp.ne.s32.totalorder %s238, %s239
    %p253 = scmp.eq.s32.totalorder %s22, 1
    %p254 = por %p252, %p253
    %p256 = scmp.ne.s32.totalorder %s239, %s255
    %p257 = scmp.eq.s32.totalorder %s22, 0
    %p258 = por %p256, %p257
    %p259 = scmp.le.s32.totalorder 1, %s16
    %p260 = scmp.lt.s32.totalorder %s16, 3
    %p261 = pnand %p259, %p260
    %p262 = pneg %p261
    // Predicated region
    $region9: #{transformer_language_model_forward.1} parent=5 // pred_check
      _
    $region10: #{transformer_language_model_forward.1} parent=5 // pred_check_branch
      %264 = sbr.rel (%p261) target = $region12
    $region11: #{transformer_language_model_forward.1} parent=5 // pred_region
      %s265 = ssub.s32 %s16, 1
      // Predicated region
      $region13: #{transformer_language_model_forward.1} parent=11 // pred_check
        %p266 = pneg %p115
      $region14: #{transformer_language_model_forward.1} parent=11 // pred_check_branch
        %268 = sbr.rel (%p266) target = $region16
      $region15: #{transformer_language_model_forward.1} parent=11 // pred_region
        _
      $region16: #{transformer_language_model_forward.1} parent=11 // pred_fallthru
        _
      // Predicated region
      $region17: #{transformer_language_model_forward.1} parent=11 // pred_check
        %p269 = pneg %p136
      $region18: #{transformer_language_model_forward.1} parent=11 // pred_check_branch
        %271 = sbr.rel (%p269) target = $region20
      $region19: #{transformer_language_model_forward.1} parent=11 // pred_region
        _
      $region20: #{transformer_language_model_forward.1} parent=11 // pred_fallthru
        _
      // Predicated region
      $region21: #{transformer_language_model_forward.1} parent=11 // pred_check
        %p272 = pneg %p157
      $region22: #{transformer_language_model_forward.1} parent=11 // pred_check_branch
        %274 = sbr.rel (%p272) target = $region24
      $region23: #{transformer_language_model_forward.1} parent=11 // pred_region
        _
      $region24: #{transformer_language_model_forward.1} parent=11 // pred_fallthru
        _
      // Predicated region
      $region25: #{transformer_language_model_forward.1} parent=11 // pred_check
        %p275 = pneg %p178
      $region26: #{transformer_language_model_forward.1} parent=11 // pred_check_branch
        %277 = sbr.rel (%p275) target = $region28
      $region27: #{transformer_language_model_forward.1} parent=11 // pred_region
        _
      $region28: #{transformer_language_model_forward.1} parent=11 // pred_fallthru
        _
      // Predicated region
      $region29: #{transformer_language_model_forward.1} parent=11 // pred_check
        %p278 = pneg %p199
      $region30: #{transformer_language_model_forward.1} parent=11 // pred_check_branch
        %280 = sbr.rel (%p278) target = $region32
      $region31: #{transformer_language_model_forward.1} parent=11 // pred_region
        _
      $region32: #{transformer_language_model_forward.1} parent=11 // pred_fallthru
        _
    $region12: #{transformer_language_model_forward.1} parent=5 // pred_fallthru
      _
    %p281 = scmp.lt.s32.totalorder %s16, 2
    // Predicated region
    $region33: #{transformer_language_model_forward.1} parent=5 // pred_check
      %p282 = pneg %p281
    $region34: #{transformer_language_model_forward.1} parent=5 // pred_check_branch
      %284 = sbr.rel (%p282) target = $region36
    $region35: #{transformer_language_model_forward.1} parent=5 // pred_region
      // Predicated region
      $region37: #{transformer_language_model_forward.1} parent=35 // pred_check
        %p285 = pneg %p36
      $region38: #{transformer_language_model_forward.1} parent=35 // pred_check_branch
        %287 = sbr.rel (%p285) target = $region40
      $region39: #{transformer_language_model_forward.1} parent=35 // pred_region
        %p288 = scmp.lt.s32.totalorder %s16, 1
        %s289 = scalar_select %p288, %s16, 1
        %s290 = smul.addr %s289, 2
        %s291 = smul.addr %s290, 4
        %s292 = scalar_lea.vmem %s0, %s291
      $region40: #{transformer_language_model_forward.1} parent=35 // pred_fallthru
        _
      // Predicated region
      $region41: #{transformer_language_model_forward.1} parent=35 // pred_check
        %p293 = pneg %p62
      $region42: #{transformer_language_model_forward.1} parent=35 // pred_check_branch
        %295 = sbr.rel (%p293) target = $region44
      $region43: #{transformer_language_model_forward.1} parent=35 // pred_region
        %p296 = scmp.lt.s32.totalorder %s16, 1
        %s297 = scalar_select %p296, %s16, 1
        %s298 = smul.addr %s297, 8
        %s299 = scalar_lea.vmem %s1, %s298
      $region44: #{transformer_language_model_forward.1} parent=35 // pred_fallthru
        _
      // Predicated region
      $region45: #{transformer_language_model_forward.1} parent=35 // pred_check
        %p300 = pneg %p88
      $region46: #{transformer_language_model_forward.1} parent=35 // pred_check_branch
        %302 = sbr.rel (%p300) target = $region48
      $region47: #{transformer_language_model_forward.1} parent=35 // pred_region
        %p303 = scmp.lt.s32.totalorder %s16, 1
        %s304 = scalar_select %p303, %s16, 1
        %s305 = smul.addr %s304, 2
        %s306 = smul.addr %s305, 8
        %s307 = scalar_lea.vmem %s2, %s306
      $region48: #{transformer_language_model_forward.1} parent=35 // pred_fallthru
        _
    $region36: #{transformer_language_model_forward.1} parent=5 // pred_fallthru
      _
    %p308 = scmp.le.s32.totalorder 1, %s16
    %p309 = scmp.lt.s32.totalorder %s16, 3
    %p310 = pnand %p308, %p309
    %p311 = pneg %p310
    // Predicated region
    $region49: #{transformer_language_model_forward.1} parent=5 // pred_check
      _
    $region50: #{transformer_language_model_forward.1} parent=5 // pred_check_branch
      %313 = sbr.rel (%p310) target = $region52
    $region51: #{transformer_language_model_forward.1} parent=5 // pred_region
      %s314 = ssub.s32 %s16, 1
      %p315 = scmp.lt.s32.totalorder %s21, 1
      %s316 = scalar_select %p315, %s21, 1
      %s317 = smul.addr %s316, 2
      %s318 = smul.addr %s317, 4
      %s319 = scalar_lea.vmem %s0, %s318
      %p320 = pneg %p42
      %p321 = pneg %p39
      %p322 = scmp.lt.s32.totalorder %s21, 1
      %s323 = scalar_select %p322, %s21, 1
      %s324 = smul.addr %s323, 8
      %s325 = scalar_lea.vmem %s1, %s324
      %p326 = pneg %p68
      %p327 = pneg %p65
      %p328 = scmp.lt.s32.totalorder %s21, 1
      %s329 = scalar_select %p328, %s21, 1
      %s330 = smul.addr %s329, 2
      %s331 = smul.addr %s330, 8
      %s332 = scalar_lea.vmem %s2, %s331
      %p333 = pneg %p94
      %p334 = pneg %p91
      %p335 = pneg %p115
      %p336 = pneg %p112
      %p337 = pneg %p136
      %p338 = pneg %p133
      %p339 = pneg %p157
      %p340 = pneg %p154
      %p341 = pneg %p178
      %p342 = pneg %p175
      %p343 = pneg %p199
      %p344 = pneg %p196
      %p345 = pneg %p225
      %p346 = pneg %p222
      %p347 = scmp.lt.s32.totalorder %s21, 1
      %s348 = scalar_select %p347, %s21, 1
      %s349 = smul.addr %s348, 2
      %s350 = smul.addr %s349, 8
      %s351 = scalar_lea.vmem %s8, %s350
      %p352 = pneg %p251
      %p353 = pneg %p248
      %p354 = scmp.lt.s32.totalorder %s21, 1
      %s355 = scalar_select %p354, %s21, 1
      %s356 = scalar_lea.vmem %s9, %s355
      %p357 = scmp.lt.s32.totalorder %s21, 1
      %s358 = scalar_select %p357, %s21, 1
      %s359 = smul.addr %s358, 2
      %s360 = smul.addr %s359, 4
      %s361 = scalar_lea.vmem %s0, %s360
      %p362 = scmp.lt.s32.totalorder %s21, 1
      %s363 = scalar_select %p362, %s21, 1
      %s364 = smul.addr %s363, 8
      %s365 = scalar_lea.vmem %s1, %s364
      %p366 = scmp.lt.s32.totalorder %s21, 1
      %s367 = scalar_select %p366, %s21, 1
      %s368 = smul.addr %s367, 2
      %s369 = smul.addr %s368, 8
      %s370 = scalar_lea.vmem %s2, %s369
      %p371 = scmp.lt.s32.totalorder %s21, 1
      %s372 = scalar_select %p371, %s21, 1
      %s373 = smul.addr %s372, 2
      %s374 = smul.addr %s373, 8
      %s375 = scalar_lea.vmem %s8, %s374
      %p376 = scmp.lt.s32.totalorder %s21, 1
      %s377 = scalar_select %p376, %s21, 1
      %s378 = scalar_lea.vmem %s9, %s377
      %v380 = vld [vmem:[%s7] sm:$0x1]
      %v381 = vld [vmem:[%s7 + $0x1] sm:$0x1]
      %v382 = vld [vmem:[%s7 + $0x2] sm:$0x1]
      %v383 = vld [vmem:[%s7 + $0x3] sm:$0x1]
      %v384 = vld [vmem:[%s7 + $0x4] sm:$0x1]
      %v385 = vld [vmem:[%s7 + $0x5] sm:$0x1]
      %v386 = vld [vmem:[%s7 + $0x6] sm:$0x1]
      %v387 = vld [vmem:[%s7 + $0x7] sm:$0x1]
      %v388 = vld [vmem:[%s7 + $0x8] sm:$0x1]
      %v389 = vld [vmem:[%s7 + $0x9] sm:$0x1]
      %v390 = vld [vmem:[%s4] sm:$0xf]
      %v391 = vld [vmem:[%s4 + $0xc] sm:$0xf]
      %v392 = vld [vmem:[%s4 + $0x18] sm:$0xf]
      %v393 = vld [vmem:[%s4 + $0x24] sm:$0xf]
      %v394 = vld [vmem:[%s4 + $0x4] sm:$0xf]
      %v395 = vld [vmem:[%s4 + $0x10] sm:$0xf]
      %v396 = vld [vmem:[%s4 + $0x1c] sm:$0xf]
      %v397 = vld [vmem:[%s4 + $0x28] sm:$0xf]
      %v398 = vld [vmem:[%s4 + $0x8] sm:$0xf]
      %v399 = vld [vmem:[%s4 + $0x14] sm:$0xf]
      %v400 = vld [vmem:[%s4 + $0x20] sm:$0xf]
      %v401 = vld [vmem:[%s4 + $0x2c] sm:$0xf]
      %v402 = vld [vmem:[%s361] sm:$0xff]
      %v403 = vld [vmem:[%s3] sm:$0xf]
      %v404 = vld [vmem:[%s3 + $0x4] sm:$0xf]
      %v405 = vld [vmem:[%s3 + $0x8] sm:$0xf]
      %v406 = vld [vmem:[%s3 + $0xc] sm:$0xf]
      %v407 = vld [vmem:[%s3 + $0x10] sm:$0xf]
      %v408 = vld [vmem:[%s3 + $0x14] sm:$0xf]
      %v409 = vld [vmem:[%s3 + $0x18] sm:$0xf]
      %v410 = vld [vmem:[%s3 + $0x1c] sm:$0xf]
      %v411 = vld [vmem:[%s3 + $0x20] sm:$0xf]
      %v412 = vld [vmem:[%s3 + $0x24] sm:$0xf]
      %v413 = vld [vmem:[%s3 + $0x28] sm:$0xf]
      %v414 = vld [vmem:[%s3 + $0x2c] sm:$0xf]
      %v415 = vld [vmem:[%s3 + $0x30] sm:$0xf]
      %v416 = vld [vmem:[%s3 + $0x34] sm:$0xf]
      %v417 = vld [vmem:[%s3 + $0x38] sm:$0xf]
      %v418 = vld [vmem:[%s3 + $0x3c] sm:$0xf]
      %v419 = vld [vmem:[%s3 + $0x40] sm:$0xf]
      %v420 = vld [vmem:[%s3 + $0x44] sm:$0xf]
      %v421 = vld [vmem:[%s3 + $0x48] sm:$0xf]
      %v422 = vld [vmem:[%s3 + $0x4c] sm:$0xf]
      %v423 = vlaneseq
      %v424 = vshrl.u32 %v423, 7
      %v425 = vsub.s32 0, %v424
      %v426 = vrot.slane %v380, %v425
      %v428 = vunpack.c.l.b16 %v402
      %v429 = vunpack.c.h.b16 %v402
      %v430 = vpack.c.b16 %v428, %v428
      %v431 = vpack.c.b16 %v429, %v429
      %v453 = vunpack.c.l.b16 %v403
      %v454 = vunpack.c.l.b16 %v404
      %v455 = vunpack.c.l.b16 %v405
      %v456 = vunpack.c.l.b16 %v406
      %v457 = vunpack.c.l.b16 %v407
      %v458 = vunpack.c.l.b16 %v408
      %v459 = vunpack.c.l.b16 %v409
      %v460 = vunpack.c.l.b16 %v410
      %v461 = vunpack.c.l.b16 %v411
      %v462 = vunpack.c.l.b16 %v412
      %v463 = vunpack.c.l.b16 %v413
      %v464 = vunpack.c.l.b16 %v414
      %v465 = vunpack.c.l.b16 %v415
      %v466 = vunpack.c.l.b16 %v416
      %v467 = vunpack.c.l.b16 %v417
      %v468 = vunpack.c.l.b16 %v418
      %v469 = vunpack.c.l.b16 %v419
      %v470 = vunpack.c.l.b16 %v420
      %v471 = vunpack.c.l.b16 %v421
      %v472 = vunpack.c.l.b16 %v422
      %v473 = vpack.c.b16 %v454, %v453
      %v474 = vpack.c.b16 %v456, %v455
      %v475 = vpack.c.b16 %v458, %v457
      %v476 = vpack.c.b16 %v460, %v459
      %v477 = vpack.c.b16 %v462, %v461
      %v478 = vpack.c.b16 %v464, %v463
      %v479 = vpack.c.b16 %v466, %v465
      %v480 = vpack.c.b16 %v468, %v467
      %v481 = vpack.c.b16 %v470, %v469
      %v482 = vpack.c.b16 %v472, %v471
      %vm493 = vcmask 261120
      %v495 = vsel %vm493, %v431, 0
      %497 = vmatprep.subr.bf16.mxu0 0
      %498 = vmatpush1.bf16.msra.mxu0 %v480
      %499 = vmatprep.subr.bf16.mxu0 0
      %500 = vmatpush1.bf16.msra.mxu0 %v479
      %501 = vmatprep.subr.bf16.mxu0 0
      %502 = vmatpush1.bf16.msra.mxu0 %v478
      %503 = vmatprep.subr.bf16.mxu0 0
      %504 = vmatpush1.bf16.msra.mxu0 %v477
      %505 = vmatprep.subr.bf16.mxu0 0
      %506 = vmatpush1.bf16.msra.mxu0 %v476
      %507 = vmatprep.subr.bf16.mxu0 0
      %508 = vmatpush1.bf16.msra.mxu0 %v475
      %509 = vmatprep.subr.bf16.mxu0 0
      %510 = vmatpush1.bf16.msra.mxu0 %v474
      %511 = vmatprep.subr.bf16.mxu0 0
      %512 = vmatpush1.bf16.msra.mxu0 %v473
      %513 = vmatprep.subr.bf16.mxu0 0
      %514 = vmatpush2.bf16.msra.mxu0 0
      %515 = vmatprep.subr.bf16.mxu0 0
      %516 = vmatpush2.bf16.msra.mxu0 0
      %517 = vmatprep.subr.bf16.mxu0 0
      %518 = vmatpush2.bf16.msra.mxu0 0
      %519 = vmatprep.subr.bf16.mxu0 0
      %520 = vmatpush2.bf16.msra.mxu0 0
      %521 = vmatprep.subr.bf16.mxu0 0
      %522 = vmatpush2.bf16.msra.mxu0 0
      %523 = vmatprep.subr.bf16.mxu0 0
      %524 = vmatpush2.bf16.msra.mxu0 0
      %525 = vmatprep.subr.bf16.mxu0 0
      %526 = vmatpush2.bf16.msra.mxu0 %v482
      %527 = vmatprep.subr.bf16.mxu0 0
      %528 = vmatpush2.bf16.msra.mxu0 %v481
      %529 = vmatprep.mubr.bf16.mxu0 %v495
      %530 = vmatmul.mubr.bf16.gmra.mxu0 %v430
      %v531 = vpop.f32.mrf.mxu0
      %v532 = vadd.f32 %v426, %v531
      %v533 = vpop.f32.mrf.mxu0
      %v534 = vpop.f32.mrf.mxu0
      %v535 = vpop.f32.mrf.mxu0
      %536 = vdwg.mxu0
      %v537 = vpack.c.bf16 %v532, %v532
      %v538 = vlaneseq
      %v539 = vshrl.u32 %v538, 7
      %v540 = vsub.s32 0, %v539
      %v541 = vrot.slane %v381, %v540
      %v546 = vunpack.c.l.b16 %v390
      %v547 = vunpack.c.l.b16 %v391
      %v548 = vunpack.c.l.b16 %v392
      %v549 = vunpack.c.l.b16 %v393
      %v550 = vpack.c.b16 %v547, %v546
      %v551 = vpack.c.b16 %v549, %v548
      %v555 = vsel %vm493, %v537, 0
      %557 = vmatprep.subr.bf16.mxu0 0
      %558 = vmatpush1.bf16.msra.mxu0 0
      %559 = vmatprep.subr.bf16.mxu0 0
      %560 = vmatpush1.bf16.msra.mxu0 0
      %561 = vmatprep.subr.bf16.mxu0 0
      %562 = vmatpush1.bf16.msra.mxu0 0
      %563 = vmatprep.subr.bf16.mxu0 0
      %564 = vmatpush1.bf16.msra.mxu0 0
      %565 = vmatprep.subr.bf16.mxu0 0
      %566 = vmatpush1.bf16.msra.mxu0 0
      %567 = vmatprep.subr.bf16.mxu0 0
      %568 = vmatpush1.bf16.msra.mxu0 0
      %569 = vmatprep.subr.bf16.mxu0 0
      %570 = vmatpush1.bf16.msra.mxu0 %v551
      %571 = vmatprep.subr.bf16.mxu0 0
      %572 = vmatpush1.bf16.msra.mxu0 %v550
      %573 = vmatprep.subr.bf16.mxu0 0
      %574 = vmatpush2.bf16.msra.mxu0 0
      %575 = vmatprep.subr.bf16.mxu0 0
      %576 = vmatpush2.bf16.msra.mxu0 0
      %577 = vmatprep.subr.bf16.mxu0 0
      %578 = vmatpush2.bf16.msra.mxu0 0
      %579 = vmatprep.subr.bf16.mxu0 0
      %580 = vmatpush2.bf16.msra.mxu0 0
      %581 = vmatprep.subr.bf16.mxu0 0
      %582 = vmatpush2.bf16.msra.mxu0 0
      %583 = vmatprep.subr.bf16.mxu0 0
      %584 = vmatpush2.bf16.msra.mxu0 0
      %585 = vmatprep.subr.bf16.mxu0 0
      %586 = vmatpush2.bf16.msra.mxu0 0
      %587 = vmatprep.subr.bf16.mxu0 0
      %588 = vmatpush2.bf16.msra.mxu0 0
      %589 = vmatprep.mubr.bf16.mxu0 0
      %590 = vmatmul.mubr.bf16.gmra.mxu0 %v555
      %v591 = vpop.f32.mrf.mxu0
      %v592 = vadd.f32 %v541, %v591
      %v593 = vpop.f32.mrf.mxu0
      %v594 = vpop.f32.mrf.mxu0
      %v595 = vpop.f32.mrf.mxu0
      %596 = vdwg.mxu0
      %v597 = vld [vmem:[%s365] sm:$0xff]
      %v598 = vpack.c.bf16 %v592, %v592
      %600 = vrot.lane.b32.xlu0 %v598, 96
      %v601 = vpop.permute.xlu0 %600
      %vm602 = vcmask 64512
      %v604 = vsel %vm602, %v598, 0
      %v607 = vsel %vm602, %v601, 0
      %609 = vmatprep.subr.bf16.mxu0 0
      %610 = vmatpush1.bf16.xpose.msra.mxu0 0
      %611 = vmatprep.subr.bf16.mxu0 0
      %612 = vmatpush1.bf16.xpose.msra.mxu0 0
      %613 = vmatprep.subr.bf16.mxu0 0
      %614 = vmatpush1.bf16.xpose.msra.mxu0 0
      %615 = vmatprep.subr.bf16.mxu0 0
      %616 = vmatpush1.bf16.xpose.msra.mxu0 0
      %617 = vmatprep.subr.bf16.mxu0 0
      %618 = vmatpush1.bf16.xpose.msra.mxu0 0
      %619 = vmatprep.subr.bf16.mxu0 0
      %620 = vmatpush1.bf16.xpose.msra.mxu0 0
      %621 = vmatprep.subr.bf16.mxu0 0
      %622 = vmatpush1.bf16.xpose.msra.mxu0 0
      %623 = vmatprep.subr.bf16.mxu0 0
      %624 = vmatpush1.bf16.xpose.msra.mxu0 %v607
      %625 = vmatprep.subr.bf16.mxu0 0
      %626 = vmatpush2.bf16.xpose.msra.mxu0 0
      %627 = vmatprep.subr.bf16.mxu0 0
      %628 = vmatpush2.bf16.xpose.msra.mxu0 0
      %629 = vmatprep.subr.bf16.mxu0 0
      %630 = vmatpush2.bf16.xpose.msra.mxu0 0
      %631 = vmatprep.subr.bf16.mxu0 0
      %632 = vmatpush2.bf16.xpose.msra.mxu0 0
      %633 = vmatprep.subr.bf16.mxu0 0
      %634 = vmatpush2.bf16.xpose.msra.mxu0 0
      %635 = vmatprep.subr.bf16.mxu0 0
      %636 = vmatpush2.bf16.xpose.msra.mxu0 0
      %637 = vmatprep.subr.bf16.mxu0 0
      %638 = vmatpush2.bf16.xpose.msra.mxu0 0
      %639 = vmatprep.subr.bf16.mxu0 0
      %640 = vmatpush2.bf16.xpose.msra.mxu0 0
      %641 = vmatprep.mubr.bf16.mxu0 0
      %642 = vmatmul.mubr.bf16.gmra.mxu0 %v604
      %v643 = vpop.f32.mrf.mxu0
      %v644 = vadd.f32 0.0, %v643
      %v645 = vpop.f32.mrf.mxu0
      %v646 = vpop.f32.mrf.mxu0
      %v647 = vpop.f32.mrf.mxu0
      %648 = vdwg.mxu0
      %v649 = vmul.f32 %v644, 0.35355338
      %vm650 = vcmp.gt.f32.partialorder %v597, 0.5
      %v651 = vsel %vm650, -1e+30, %v649
      %v652 = vsel %vm602, %v651, -inf
      %653 = vmax.xlane.f32.xlu0 %v652
      %v654 = vpop.xlane.xlu0 %653
      %v655 = vsub.f32 %v651, %v654
      %v656 = vmul.f32 %v655, 1.442695
      %v657 = vpow.pop %v656
      %v658 = vsel %vm602, %v657, 0.0
      %659 = vadd.xlane.f32.xlu0 %v658
      %v660 = vpop.xlane.xlu0 %659
      %v661 = vrcp.pop %v660
      %v662 = vmul.f32 %v657, %v661
      %v663 = vpack.c.bf16 %v662, %v662
      %664 = vrot.lane.b32.xlu0 %v598, 64
      %v665 = vpop.permute.xlu0 %664
      %v667 = vsel %vm602, %v663, 0
      %vm669 = vcmask 1043456
      %v671 = vsel %vm669, %v665, 0
      %673 = vmatprep.subr.bf16.mxu0 0
      %674 = vmatpush1.bf16.msra.mxu0 0
      %675 = vmatprep.subr.bf16.mxu0 0
      %676 = vmatpush1.bf16.msra.mxu0 0
      %677 = vmatprep.subr.bf16.mxu0 0
      %678 = vmatpush1.bf16.msra.mxu0 0
      %679 = vmatprep.subr.bf16.mxu0 0
      %680 = vmatpush1.bf16.msra.mxu0 0
      %681 = vmatprep.subr.bf16.mxu0 0
      %682 = vmatpush1.bf16.msra.mxu0 0
      %683 = vmatprep.subr.bf16.mxu0 0
      %684 = vmatpush1.bf16.msra.mxu0 0
      %685 = vmatprep.subr.bf16.mxu0 0
      %686 = vmatpush1.bf16.msra.mxu0 0
      %687 = vmatprep.subr.bf16.mxu0 0
      %688 = vmatpush1.bf16.msra.mxu0 %v671
      %689 = vmatprep.subr.bf16.mxu0 0
      %690 = vmatpush2.bf16.msra.mxu0 0
      %691 = vmatprep.subr.bf16.mxu0 0
      %692 = vmatpush2.bf16.msra.mxu0 0
      %693 = vmatprep.subr.bf16.mxu0 0
      %694 = vmatpush2.bf16.msra.mxu0 0
      %695 = vmatprep.subr.bf16.mxu0 0
      %696 = vmatpush2.bf16.msra.mxu0 0
      %697 = vmatprep.subr.bf16.mxu0 0
      %698 = vmatpush2.bf16.msra.mxu0 0
      %699 = vmatprep.subr.bf16.mxu0 0
      %700 = vmatpush2.bf16.msra.mxu0 0
      %701 = vmatprep.subr.bf16.mxu0 0
      %702 = vmatpush2.bf16.msra.mxu0 0
      %703 = vmatprep.subr.bf16.mxu0 0
      %704 = vmatpush2.bf16.msra.mxu0 0
      %705 = vmatprep.mubr.bf16.mxu0 0
      %706 = vmatmul.mubr.bf16.gmra.mxu0 %v667
      %v707 = vpop.f32.mrf.mxu0
      %v708 = vadd.f32 0.0, %v707
      %v709 = vpop.f32.mrf.mxu0
      %v710 = vpop.f32.mrf.mxu0
      %v711 = vpop.f32.mrf.mxu0
      %712 = vdwg.mxu0
      %713 = vrot.lane.b32.xlu0 %v598, 120
      %v714 = vpop.permute.xlu0 %713
      %715 = vrot.lane.b32.xlu0 %v598, 88
      %v716 = vpop.permute.xlu0 %715
      %v718 = vsel %vm602, %v714, 0
      %v721 = vsel %vm602, %v716, 0
      %723 = vmatprep.subr.bf16.mxu0 0
      %724 = vmatpush1.bf16.xpose.msra.mxu0 0
      %725 = vmatprep.subr.bf16.mxu0 0
      %726 = vmatpush1.bf16.xpose.msra.mxu0 0
      %727 = vmatprep.subr.bf16.mxu0 0
      %728 = vmatpush1.bf16.xpose.msra.mxu0 0
      %729 = vmatprep.subr.bf16.mxu0 0
      %730 = vmatpush1.bf16.xpose.msra.mxu0 0
      %731 = vmatprep.subr.bf16.mxu0 0
      %732 = vmatpush1.bf16.xpose.msra.mxu0 0
      %733 = vmatprep.subr.bf16.mxu0 0
      %734 = vmatpush1.bf16.xpose.msra.mxu0 0
      %735 = vmatprep.subr.bf16.mxu0 0
      %736 = vmatpush1.bf16.xpose.msra.mxu0 0
      %737 = vmatprep.subr.bf16.mxu0 0
      %738 = vmatpush1.bf16.xpose.msra.mxu0 %v721
      %739 = vmatprep.subr.bf16.mxu0 0
      %740 = vmatpush2.bf16.xpose.msra.mxu0 0
      %741 = vmatprep.subr.bf16.mxu0 0
      %742 = vmatpush2.bf16.xpose.msra.mxu0 0
      %743 = vmatprep.subr.bf16.mxu0 0
      %744 = vmatpush2.bf16.xpose.msra.mxu0 0
      %745 = vmatprep.subr.bf16.mxu0 0
      %746 = vmatpush2.bf16.xpose.msra.mxu0 0
      %747 = vmatprep.subr.bf16.mxu0 0
      %748 = vmatpush2.bf16.xpose.msra.mxu0 0
      %749 = vmatprep.subr.bf16.mxu0 0
      %750 = vmatpush2.bf16.xpose.msra.mxu0 0
      %751 = vmatprep.subr.bf16.mxu0 0
      %752 = vmatpush2.bf16.xpose.msra.mxu0 0
      %753 = vmatprep.subr.bf16.mxu0 0
      %754 = vmatpush2.bf16.xpose.msra.mxu0 0
      %755 = vmatprep.mubr.bf16.mxu0 0
      %756 = vmatmul.mubr.bf16.gmra.mxu0 %v718
      %v757 = vpop.f32.mrf.mxu0
      %v758 = vadd.f32 0.0, %v757
      %v759 = vpop.f32.mrf.mxu0
      %v760 = vpop.f32.mrf.mxu0
      %v761 = vpop.f32.mrf.mxu0
      %762 = vdwg.mxu0
      %v763 = vmul.f32 %v758, 0.35355338
      %v764 = vsel %vm650, -1e+30, %v763
      %v765 = vsel %vm602, %v764, -inf
      %766 = vmax.xlane.f32.xlu0 %v765
      %v767 = vpop.xlane.xlu0 %766
      %v768 = vsub.f32 %v764, %v767
      %v769 = vmul.f32 %v768, 1.442695
      %v770 = vpow.pop %v769
      %v771 = vsel %vm602, %v770, 0.0
      %772 = vadd.xlane.f32.xlu0 %v771
      %v773 = vpop.xlane.xlu0 %772
      %v774 = vrcp.pop %v773
      %v775 = vmul.f32 %v770, %v774
      %v776 = vpack.c.bf16 %v775, %v775
      %777 = vrot.lane.b32.xlu0 %v598, 56
      %v778 = vpop.permute.xlu0 %777
      %v780 = vsel %vm602, %v776, 0
      %v783 = vsel %vm669, %v778, 0
      %785 = vmatprep.subr.bf16.mxu0 0
      %786 = vmatpush1.bf16.msra.mxu0 0
      %787 = vmatprep.subr.bf16.mxu0 0
      %788 = vmatpush1.bf16.msra.mxu0 0
      %789 = vmatprep.subr.bf16.mxu0 0
      %790 = vmatpush1.bf16.msra.mxu0 0
      %791 = vmatprep.subr.bf16.mxu0 0
      %792 = vmatpush1.bf16.msra.mxu0 0
      %793 = vmatprep.subr.bf16.mxu0 0
      %794 = vmatpush1.bf16.msra.mxu0 0
      %795 = vmatprep.subr.bf16.mxu0 0
      %796 = vmatpush1.bf16.msra.mxu0 0
      %797 = vmatprep.subr.bf16.mxu0 0
      %798 = vmatpush1.bf16.msra.mxu0 0
      %799 = vmatprep.subr.bf16.mxu0 0
      %800 = vmatpush1.bf16.msra.mxu0 %v783
      %801 = vmatprep.subr.bf16.mxu0 0
      %802 = vmatpush2.bf16.msra.mxu0 0
      %803 = vmatprep.subr.bf16.mxu0 0
      %804 = vmatpush2.bf16.msra.mxu0 0
      %805 = vmatprep.subr.bf16.mxu0 0
      %806 = vmatpush2.bf16.msra.mxu0 0
      %807 = vmatprep.subr.bf16.mxu0 0
      %808 = vmatpush2.bf16.msra.mxu0 0
      %809 = vmatprep.subr.bf16.mxu0 0
      %810 = vmatpush2.bf16.msra.mxu0 0
      %811 = vmatprep.subr.bf16.mxu0 0
      %812 = vmatpush2.bf16.msra.mxu0 0
      %813 = vmatprep.subr.bf16.mxu0 0
      %814 = vmatpush2.bf16.msra.mxu0 0
      %815 = vmatprep.subr.bf16.mxu0 0
      %816 = vmatpush2.bf16.msra.mxu0 0
      %817 = vmatprep.mubr.bf16.mxu0 0
      %818 = vmatmul.mubr.bf16.gmra.mxu0 %v780
      %v819 = vpop.f32.mrf.mxu0
      %v820 = vadd.f32 0.0, %v819
      %v821 = vpop.f32.mrf.mxu0
      %v822 = vpop.f32.mrf.mxu0
      %v823 = vpop.f32.mrf.mxu0
      %824 = vdwg.mxu0
      %825 = vrot.lane.b32.xlu0 %v598, 112
      %v826 = vpop.permute.xlu0 %825
      %827 = vrot.lane.b32.xlu0 %v598, 80
      %v828 = vpop.permute.xlu0 %827
      %v830 = vsel %vm602, %v826, 0
      %v833 = vsel %vm602, %v828, 0
      %835 = vmatprep.subr.bf16.mxu0 0
      %836 = vmatpush1.bf16.xpose.msra.mxu0 0
      %837 = vmatprep.subr.bf16.mxu0 0
      %838 = vmatpush1.bf16.xpose.msra.mxu0 0
      %839 = vmatprep.subr.bf16.mxu0 0
      %840 = vmatpush1.bf16.xpose.msra.mxu0 0
      %841 = vmatprep.subr.bf16.mxu0 0
      %842 = vmatpush1.bf16.xpose.msra.mxu0 0
      %843 = vmatprep.subr.bf16.mxu0 0
      %844 = vmatpush1.bf16.xpose.msra.mxu0 0
      %845 = vmatprep.subr.bf16.mxu0 0
      %846 = vmatpush1.bf16.xpose.msra.mxu0 0
      %847 = vmatprep.subr.bf16.mxu0 0
      %848 = vmatpush1.bf16.xpose.msra.mxu0 0
      %849 = vmatprep.subr.bf16.mxu0 0
      %850 = vmatpush1.bf16.xpose.msra.mxu0 %v833
      %851 = vmatprep.subr.bf16.mxu0 0
      %852 = vmatpush2.bf16.xpose.msra.mxu0 0
      %853 = vmatprep.subr.bf16.mxu0 0
      %854 = vmatpush2.bf16.xpose.msra.mxu0 0
      %855 = vmatprep.subr.bf16.mxu0 0
      %856 = vmatpush2.bf16.xpose.msra.mxu0 0
      %857 = vmatprep.subr.bf16.mxu0 0
      %858 = vmatpush2.bf16.xpose.msra.mxu0 0
      %859 = vmatprep.subr.bf16.mxu0 0
      %860 = vmatpush2.bf16.xpose.msra.mxu0 0
      %861 = vmatprep.subr.bf16.mxu0 0
      %862 = vmatpush2.bf16.xpose.msra.mxu0 0
      %863 = vmatprep.subr.bf16.mxu0 0
      %864 = vmatpush2.bf16.xpose.msra.mxu0 0
      %865 = vmatprep.subr.bf16.mxu0 0
      %866 = vmatpush2.bf16.xpose.msra.mxu0 0
      %867 = vmatprep.mubr.bf16.mxu0 0
      %868 = vmatmul.mubr.bf16.gmra.mxu0 %v830
      %v869 = vpop.f32.mrf.mxu0
      %v870 = vadd.f32 0.0, %v869
      %v871 = vpop.f32.mrf.mxu0
      %v872 = vpop.f32.mrf.mxu0
      %v873 = vpop.f32.mrf.mxu0
      %874 = vdwg.mxu0
      %v875 = vmul.f32 %v870, 0.35355338
      %v876 = vsel %vm650, -1e+30, %v875
      %v877 = vsel %vm602, %v876, -inf
      %878 = vmax.xlane.f32.xlu0 %v877
      %v879 = vpop.xlane.xlu0 %878
      %v880 = vsub.f32 %v876, %v879
      %v881 = vmul.f32 %v880, 1.442695
      %v882 = vpow.pop %v881
      %v883 = vsel %vm602, %v882, 0.0
      %884 = vadd.xlane.f32.xlu0 %v883
      %v885 = vpop.xlane.xlu0 %884
      %v886 = vrcp.pop %v885
      %v887 = vmul.f32 %v882, %v886
      %v888 = vpack.c.bf16 %v887, %v887
      %889 = vrot.lane.b32.xlu0 %v598, 48
      %v890 = vpop.permute.xlu0 %889
      %v892 = vsel %vm602, %v888, 0
      %v895 = vsel %vm669, %v890, 0
      %897 = vmatprep.subr.bf16.mxu0 0
      %898 = vmatpush1.bf16.msra.mxu0 0
      %899 = vmatprep.subr.bf16.mxu0 0
      %900 = vmatpush1.bf16.msra.mxu0 0
      %901 = vmatprep.subr.bf16.mxu0 0
      %902 = vmatpush1.bf16.msra.mxu0 0
      %903 = vmatprep.subr.bf16.mxu0 0
      %904 = vmatpush1.bf16.msra.mxu0 0
      %905 = vmatprep.subr.bf16.mxu0 0
      %906 = vmatpush1.bf16.msra.mxu0 0
      %907 = vmatprep.subr.bf16.mxu0 0
      %908 = vmatpush1.bf16.msra.mxu0 0
      %909 = vmatprep.subr.bf16.mxu0 0
      %910 = vmatpush1.bf16.msra.mxu0 0
      %911 = vmatprep.subr.bf16.mxu0 0
      %912 = vmatpush1.bf16.msra.mxu0 %v895
      %913 = vmatprep.subr.bf16.mxu0 0
      %914 = vmatpush2.bf16.msra.mxu0 0
      %915 = vmatprep.subr.bf16.mxu0 0
      %916 = vmatpush2.bf16.msra.mxu0 0
      %917 = vmatprep.subr.bf16.mxu0 0
      %918 = vmatpush2.bf16.msra.mxu0 0
      %919 = vmatprep.subr.bf16.mxu0 0
      %920 = vmatpush2.bf16.msra.mxu0 0
      %921 = vmatprep.subr.bf16.mxu0 0
      %922 = vmatpush2.bf16.msra.mxu0 0
      %923 = vmatprep.subr.bf16.mxu0 0
      %924 = vmatpush2.bf16.msra.mxu0 0
      %925 = vmatprep.subr.bf16.mxu0 0
      %926 = vmatpush2.bf16.msra.mxu0 0
      %927 = vmatprep.subr.bf16.mxu0 0
      %928 = vmatpush2.bf16.msra.mxu0 0
      %929 = vmatprep.mubr.bf16.mxu0 0
      %930 = vmatmul.mubr.bf16.gmra.mxu0 %v892
      %v931 = vpop.f32.mrf.mxu0
      %v932 = vadd.f32 0.0, %v931
      %v933 = vpop.f32.mrf.mxu0
      %v934 = vpop.f32.mrf.mxu0
      %v935 = vpop.f32.mrf.mxu0
      %936 = vdwg.mxu0
      %937 = vrot.lane.b32.xlu0 %v598, 104
      %v938 = vpop.permute.xlu0 %937
      %939 = vrot.lane.b32.xlu0 %v598, 72
      %v940 = vpop.permute.xlu0 %939
      %v942 = vsel %vm602, %v938, 0
      %v945 = vsel %vm602, %v940, 0
      %947 = vmatprep.subr.bf16.mxu0 0
      %948 = vmatpush1.bf16.xpose.msra.mxu0 0
      %949 = vmatprep.subr.bf16.mxu0 0
      %950 = vmatpush1.bf16.xpose.msra.mxu0 0
      %951 = vmatprep.subr.bf16.mxu0 0
      %952 = vmatpush1.bf16.xpose.msra.mxu0 0
      %953 = vmatprep.subr.bf16.mxu0 0
      %954 = vmatpush1.bf16.xpose.msra.mxu0 0
      %955 = vmatprep.subr.bf16.mxu0 0
      %956 = vmatpush1.bf16.xpose.msra.mxu0 0
      %957 = vmatprep.subr.bf16.mxu0 0
      %958 = vmatpush1.bf16.xpose.msra.mxu0 0
      %959 = vmatprep.subr.bf16.mxu0 0
      %960 = vmatpush1.bf16.xpose.msra.mxu0 0
      %961 = vmatprep.subr.bf16.mxu0 0
      %962 = vmatpush1.bf16.xpose.msra.mxu0 %v945
      %963 = vmatprep.subr.bf16.mxu0 0
      %964 = vmatpush2.bf16.xpose.msra.mxu0 0
      %965 = vmatprep.subr.bf16.mxu0 0
      %966 = vmatpush2.bf16.xpose.msra.mxu0 0
      %967 = vmatprep.subr.bf16.mxu0 0
      %968 = vmatpush2.bf16.xpose.msra.mxu0 0
      %969 = vmatprep.subr.bf16.mxu0 0
      %970 = vmatpush2.bf16.xpose.msra.mxu0 0
      %971 = vmatprep.subr.bf16.mxu0 0
      %972 = vmatpush2.bf16.xpose.msra.mxu0 0
      %973 = vmatprep.subr.bf16.mxu0 0
      %974 = vmatpush2.bf16.xpose.msra.mxu0 0
      %975 = vmatprep.subr.bf16.mxu0 0
      %976 = vmatpush2.bf16.xpose.msra.mxu0 0
      %977 = vmatprep.subr.bf16.mxu0 0
      %978 = vmatpush2.bf16.xpose.msra.mxu0 0
      %979 = vmatprep.mubr.bf16.mxu0 0
      %980 = vmatmul.mubr.bf16.gmra.mxu0 %v942
      %v981 = vpop.f32.mrf.mxu0
      %v982 = vadd.f32 0.0, %v981
      %v983 = vpop.f32.mrf.mxu0
      %v984 = vpop.f32.mrf.mxu0
      %v985 = vpop.f32.mrf.mxu0
      %986 = vdwg.mxu0
      %v987 = vmul.f32 %v982, 0.35355338
      %v988 = vsel %vm650, -1e+30, %v987
      %v989 = vsel %vm602, %v988, -inf
      %990 = vmax.xlane.f32.xlu0 %v989
      %v991 = vpop.xlane.xlu0 %990
      %v992 = vsub.f32 %v988, %v991
      %v993 = vmul.f32 %v992, 1.442695
      %v994 = vpow.pop %v993
      %v995 = vsel %vm602, %v994, 0.0
      %996 = vadd.xlane.f32.xlu0 %v995
      %v997 = vpop.xlane.xlu0 %996
      %v998 = vrcp.pop %v997
      %v999 = vmul.f32 %v994, %v998
      %v1000 = vpack.c.bf16 %v999, %v999
      %1001 = vrot.lane.b32.xlu0 %v598, 40
      %v1002 = vpop.permute.xlu0 %1001
      %v1004 = vsel %vm602, %v1000, 0
      %v1007 = vsel %vm669, %v1002, 0
      %1009 = vmatprep.subr.bf16.mxu0 0
      %1010 = vmatpush1.bf16.msra.mxu0 0
      %1011 = vmatprep.subr.bf16.mxu0 0
      %1012 = vmatpush1.bf16.msra.mxu0 0
      %1013 = vmatprep.subr.bf16.mxu0 0
      %1014 = vmatpush1.bf16.msra.mxu0 0
      %1015 = vmatprep.subr.bf16.mxu0 0
      %1016 = vmatpush1.bf16.msra.mxu0 0
      %1017 = vmatprep.subr.bf16.mxu0 0
      %1018 = vmatpush1.bf16.msra.mxu0 0
      %1019 = vmatprep.subr.bf16.mxu0 0
      %1020 = vmatpush1.bf16.msra.mxu0 0
      %1021 = vmatprep.subr.bf16.mxu0 0
      %1022 = vmatpush1.bf16.msra.mxu0 0
      %1023 = vmatprep.subr.bf16.mxu0 0
      %1024 = vmatpush1.bf16.msra.mxu0 %v1007
      %1025 = vmatprep.subr.bf16.mxu0 0
      %1026 = vmatpush2.bf16.msra.mxu0 0
      %1027 = vmatprep.subr.bf16.mxu0 0
      %1028 = vmatpush2.bf16.msra.mxu0 0
      %1029 = vmatprep.subr.bf16.mxu0 0
      %1030 = vmatpush2.bf16.msra.mxu0 0
      %1031 = vmatprep.subr.bf16.mxu0 0
      %1032 = vmatpush2.bf16.msra.mxu0 0
      %1033 = vmatprep.subr.bf16.mxu0 0
      %1034 = vmatpush2.bf16.msra.mxu0 0
      %1035 = vmatprep.subr.bf16.mxu0 0
      %1036 = vmatpush2.bf16.msra.mxu0 0
      %1037 = vmatprep.subr.bf16.mxu0 0
      %1038 = vmatpush2.bf16.msra.mxu0 0
      %1039 = vmatprep.subr.bf16.mxu0 0
      %1040 = vmatpush2.bf16.msra.mxu0 0
      %1041 = vmatprep.mubr.bf16.mxu0 0
      %1042 = vmatmul.mubr.bf16.gmra.mxu0 %v1004
      %v1043 = vpop.f32.mrf.mxu0
      %v1044 = vadd.f32 0.0, %v1043
      %v1045 = vpop.f32.mrf.mxu0
      %v1046 = vpop.f32.mrf.mxu0
      %v1047 = vpop.f32.mrf.mxu0
      %1048 = vdwg.mxu0
      %1050 = vrot.lane.b32.xlu0 %v820, 8
      %v1051 = vpop.permute.xlu0 %1050
      %1054 = vrot.lane.b32.xlu0 %v932, 16
      %v1055 = vpop.permute.xlu0 %1054
      %1058 = vrot.lane.b32.xlu0 %v1044, 24
      %v1059 = vpop.permute.xlu0 %1058
      %v1061 = vsel %vm602, %v708, %v1051
      %vm1062 = vcmask 130048
      %v1063 = vsel %vm1062, %v1061, %v1055
      %vm1064 = vcmask 195584
      %v1065 = vsel %vm1064, %v1063, %v1059
      %v1066 = vpack.c.bf16 %v1065, %v1065
      %v1067 = vlaneseq
      %v1068 = vshrl.u32 %v1067, 7
      %v1069 = vsub.s32 0, %v1068
      %v1070 = vrot.slane %v382, %v1069
      %v1075 = vunpack.c.l.b16 %v398
      %v1076 = vunpack.c.l.b16 %v399
      %v1077 = vunpack.c.l.b16 %v400
      %v1078 = vunpack.c.l.b16 %v401
      %v1079 = vpack.c.b16 %v1076, %v1075
      %v1080 = vpack.c.b16 %v1078, %v1077
      %1081 = vrot.lane.b32.xlu0 %v1079, 64
      %v1082 = vpop.permute.xlu0 %1081
      %1083 = vrot.lane.b32.xlu0 %v1080, 64
      %v1084 = vpop.permute.xlu0 %1083
      %v1088 = vsel %vm493, %v1066, 0
      %1090 = vmatprep.subr.bf16.mxu0 0
      %1091 = vmatpush1.bf16.msra.mxu0 0
      %1092 = vmatprep.subr.bf16.mxu0 0
      %1093 = vmatpush1.bf16.msra.mxu0 0
      %1094 = vmatprep.subr.bf16.mxu0 0
      %1095 = vmatpush1.bf16.msra.mxu0 0
      %1096 = vmatprep.subr.bf16.mxu0 0
      %1097 = vmatpush1.bf16.msra.mxu0 0
      %1098 = vmatprep.subr.bf16.mxu0 0
      %1099 = vmatpush1.bf16.msra.mxu0 0
      %1100 = vmatprep.subr.bf16.mxu0 0
      %1101 = vmatpush1.bf16.msra.mxu0 0
      %1102 = vmatprep.subr.bf16.mxu0 0
      %1103 = vmatpush1.bf16.msra.mxu0 %v1084
      %1104 = vmatprep.subr.bf16.mxu0 0
      %1105 = vmatpush1.bf16.msra.mxu0 %v1082
      %1106 = vmatprep.subr.bf16.mxu0 0
      %1107 = vmatpush2.bf16.msra.mxu0 0
      %1108 = vmatprep.subr.bf16.mxu0 0
      %1109 = vmatpush2.bf16.msra.mxu0 0
      %1110 = vmatprep.subr.bf16.mxu0 0
      %1111 = vmatpush2.bf16.msra.mxu0 0
      %1112 = vmatprep.subr.bf16.mxu0 0
      %1113 = vmatpush2.bf16.msra.mxu0 0
      %1114 = vmatprep.subr.bf16.mxu0 0
      %1115 = vmatpush2.bf16.msra.mxu0 0
      %1116 = vmatprep.subr.bf16.mxu0 0
      %1117 = vmatpush2.bf16.msra.mxu0 0
      %1118 = vmatprep.subr.bf16.mxu0 0
      %1119 = vmatpush2.bf16.msra.mxu0 0
      %1120 = vmatprep.subr.bf16.mxu0 0
      %1121 = vmatpush2.bf16.msra.mxu0 0
      %1122 = vmatprep.mubr.bf16.mxu0 0
      %1123 = vmatmul.mubr.bf16.gmra.mxu0 %v1088
      %v1124 = vpop.f32.mrf.mxu0
      %v1125 = vadd.f32 %v1070, %v1124
      %v1126 = vpop.f32.mrf.mxu0
      %v1127 = vpop.f32.mrf.mxu0
      %v1128 = vpop.f32.mrf.mxu0
      %1129 = vdwg.mxu0
      %v1130 = vadd.f32 %v532, %v1125
      %v1131 = vsel %vm493, %v1130, 0.0
      %1132 = vadd.xlane.f32.xlu0 %v1131
      %v1133 = vpop.xlane.xlu0 %1132
      %v1134 = vrcp.pop 32.0
      %v1135 = vmul.f32 %v1133, %v1134
      %v1136 = vsub.f32 %v1130, %v1135
      %v1137 = vmul.f32 %v1136, %v1136
      %v1138 = vsel %vm493, %v1137, 0.0
      %1139 = vadd.xlane.f32.xlu0 %v1138
      %v1140 = vpop.xlane.xlu0 %1139
      %v1141 = vmul.f32 %v1140, %v1134
      %v1142 = vadd.f32 %v1141, 1e-05
      %v1143 = vrsqrt.pop %v1142
      %v1144 = vmul.f32 %v1136, %v1143
      %v1145 = vlaneseq
      %v1146 = vshrl.u32 %v1145, 7
      %v1147 = vsub.s32 0, %v1146
      %v1148 = vrot.slane %v383, %v1147
      %v1149 = vmul.f32 %v1144, %v1148
      %v1150 = vlaneseq
      %v1151 = vshrl.u32 %v1150, 7
      %v1152 = vsub.s32 0, %v1151
      %v1153 = vrot.slane %v384, %v1152
      %v1154 = vadd.f32 %v1149, %v1153
      %v1155 = vpack.c.bf16 %v1154, %v1154
      %v1156 = vlaneseq
      %v1157 = vshrl.u32 %v1156, 7
      %v1158 = vsub.s32 0, %v1157
      %v1159 = vrot.slane %v385, %v1158
      %v1163 = vsel %vm493, %v1155, 0
      %1165 = vmatprep.subr.bf16.mxu0 0
      %1166 = vmatpush1.bf16.msra.mxu0 0
      %1167 = vmatprep.subr.bf16.mxu0 0
      %1168 = vmatpush1.bf16.msra.mxu0 0
      %1169 = vmatprep.subr.bf16.mxu0 0
      %1170 = vmatpush1.bf16.msra.mxu0 0
      %1171 = vmatprep.subr.bf16.mxu0 0
      %1172 = vmatpush1.bf16.msra.mxu0 0
      %1173 = vmatprep.subr.bf16.mxu0 0
      %1174 = vmatpush1.bf16.msra.mxu0 0
      %1175 = vmatprep.subr.bf16.mxu0 0
      %1176 = vmatpush1.bf16.msra.mxu0 0
      %1177 = vmatprep.subr.bf16.mxu0 0
      %1178 = vmatpush1.bf16.msra.mxu0 %v1080
      %1179 = vmatprep.subr.bf16.mxu0 0
      %1180 = vmatpush1.bf16.msra.mxu0 %v1079
      %1181 = vmatprep.subr.bf16.mxu0 0
      %1182 = vmatpush2.bf16.msra.mxu0 0
      %1183 = vmatprep.subr.bf16.mxu0 0
      %1184 = vmatpush2.bf16.msra.mxu0 0
      %1185 = vmatprep.subr.bf16.mxu0 0
      %1186 = vmatpush2.bf16.msra.mxu0 0
      %1187 = vmatprep.subr.bf16.mxu0 0
      %1188 = vmatpush2.bf16.msra.mxu0 0
      %1189 = vmatprep.subr.bf16.mxu0 0
      %1190 = vmatpush2.bf16.msra.mxu0 0
      %1191 = vmatprep.subr.bf16.mxu0 0
      %1192 = vmatpush2.bf16.msra.mxu0 0
      %1193 = vmatprep.subr.bf16.mxu0 0
      %1194 = vmatpush2.bf16.msra.mxu0 0
      %1195 = vmatprep.subr.bf16.mxu0 0
      %1196 = vmatpush2.bf16.msra.mxu0 0
      %1197 = vmatprep.mubr.bf16.mxu0 0
      %1198 = vmatmul.mubr.bf16.gmra.mxu0 %v1163
      %v1199 = vpop.f32.mrf.mxu0
      %v1200 = vadd.f32 %v1159, %v1199
      %v1201 = vpop.f32.mrf.mxu0
      %v1202 = vpop.f32.mrf.mxu0
      %v1203 = vpop.f32.mrf.mxu0
      %1204 = vdwg.mxu0
      %v1205 = vmax.f32 %v1200, 0.0
      %v1206 = vpack.c.bf16 %v1205, %v1205
      %v1207 = vld [vmem:[%s5] sm:$0xf]
      %v1208 = vld [vmem:[%s5 + $0x4] sm:$0xf]
      %v1209 = vld [vmem:[%s5 + $0x8] sm:$0xf]
      %v1210 = vld [vmem:[%s5 + $0xc] sm:$0xf]
      %v1211 = vld [vmem:[%s5 + $0x10] sm:$0xf]
      %v1212 = vld [vmem:[%s5 + $0x14] sm:$0xf]
      %v1213 = vld [vmem:[%s5 + $0x18] sm:$0xf]
      %v1214 = vld [vmem:[%s5 + $0x1c] sm:$0xf]
      %v1215 = vlaneseq
      %v1216 = vshrl.u32 %v1215, 7
      %v1217 = vsub.s32 0, %v1216
      %v1218 = vrot.slane %v386, %v1217
      %v1227 = vunpack.c.l.b16 %v1207
      %v1228 = vunpack.c.l.b16 %v1208
      %v1229 = vunpack.c.l.b16 %v1209
      %v1230 = vunpack.c.l.b16 %v1210
      %v1231 = vunpack.c.l.b16 %v1211
      %v1232 = vunpack.c.l.b16 %v1212
      %v1233 = vunpack.c.l.b16 %v1213
      %v1234 = vunpack.c.l.b16 %v1214
      %v1235 = vpack.c.b16 %v1228, %v1227
      %v1236 = vpack.c.b16 %v1230, %v1229
      %v1237 = vpack.c.b16 %v1232, %v1231
      %v1238 = vpack.c.b16 %v1234, %v1233
      %vm1243 = vcmask 523264
      %v1245 = vsel %vm1243, %v1206, 0
      %1247 = vmatprep.subr.bf16.mxu0 0
      %1248 = vmatpush1.bf16.msra.mxu0 0
      %1249 = vmatprep.subr.bf16.mxu0 0
      %1250 = vmatpush1.bf16.msra.mxu0 0
      %1251 = vmatprep.subr.bf16.mxu0 0
      %1252 = vmatpush1.bf16.msra.mxu0 0
      %1253 = vmatprep.subr.bf16.mxu0 0
      %1254 = vmatpush1.bf16.msra.mxu0 0
      %1255 = vmatprep.subr.bf16.mxu0 0
      %1256 = vmatpush1.bf16.msra.mxu0 %v1238
      %1257 = vmatprep.subr.bf16.mxu0 0
      %1258 = vmatpush1.bf16.msra.mxu0 %v1237
      %1259 = vmatprep.subr.bf16.mxu0 0
      %1260 = vmatpush1.bf16.msra.mxu0 %v1236
      %1261 = vmatprep.subr.bf16.mxu0 0
      %1262 = vmatpush1.bf16.msra.mxu0 %v1235
      %1263 = vmatprep.subr.bf16.mxu0 0
      %1264 = vmatpush2.bf16.msra.mxu0 0
      %1265 = vmatprep.subr.bf16.mxu0 0
      %1266 = vmatpush2.bf16.msra.mxu0 0
      %1267 = vmatprep.subr.bf16.mxu0 0
      %1268 = vmatpush2.bf16.msra.mxu0 0
      %1269 = vmatprep.subr.bf16.mxu0 0
      %1270 = vmatpush2.bf16.msra.mxu0 0
      %1271 = vmatprep.subr.bf16.mxu0 0
      %1272 = vmatpush2.bf16.msra.mxu0 0
      %1273 = vmatprep.subr.bf16.mxu0 0
      %1274 = vmatpush2.bf16.msra.mxu0 0
      %1275 = vmatprep.subr.bf16.mxu0 0
      %1276 = vmatpush2.bf16.msra.mxu0 0
      %1277 = vmatprep.subr.bf16.mxu0 0
      %1278 = vmatpush2.bf16.msra.mxu0 0
      %1279 = vmatprep.mubr.bf16.mxu0 0
      %1280 = vmatmul.mubr.bf16.gmra.mxu0 %v1245
      %v1281 = vpop.f32.mrf.mxu0
      %v1282 = vadd.f32 %v1218, %v1281
      %v1283 = vpop.f32.mrf.mxu0
      %v1284 = vpop.f32.mrf.mxu0
      %v1285 = vpop.f32.mrf.mxu0
      %1286 = vdwg.mxu0
      %v1287 = vadd.f32 %v1154, %v1282
      %v1288 = vsel %vm493, %v1287, 0.0
      %1289 = vadd.xlane.f32.xlu0 %v1288
      %v1290 = vpop.xlane.xlu0 %1289
      %v1291 = vmul.f32 %v1290, %v1134
      %v1292 = vsub.f32 %v1287, %v1291
      %v1293 = vmul.f32 %v1292, %v1292
      %v1294 = vsel %vm493, %v1293, 0.0
      %1295 = vadd.xlane.f32.xlu0 %v1294
      %v1296 = vpop.xlane.xlu0 %1295
      %v1297 = vmul.f32 %v1296, %v1134
      %v1298 = vadd.f32 %v1297, 1e-05
      %v1299 = vrsqrt.pop %v1298
      %v1300 = vmul.f32 %v1292, %v1299
      %v1301 = vlaneseq
      %v1302 = vshrl.u32 %v1301, 7
      %v1303 = vsub.s32 0, %v1302
      %v1304 = vrot.slane %v387, %v1303
      %v1305 = vmul.f32 %v1300, %v1304
      %v1306 = vlaneseq
      %v1307 = vshrl.u32 %v1306, 7
      %v1308 = vsub.s32 0, %v1307
      %v1309 = vrot.slane %v388, %v1308
      %v1310 = vadd.f32 %v1305, %v1309
      %v1311 = vpack.c.bf16 %v1310, %v1310
      %v1312 = vlaneseq
      %v1313 = vshrl.u32 %v1312, 7
      %v1314 = vsub.s32 0, %v1313
      %v1315 = vrot.slane %v389, %v1314
      %v1320 = vunpack.c.l.b16 %v394
      %v1321 = vunpack.c.l.b16 %v395
      %v1322 = vunpack.c.l.b16 %v396
      %v1323 = vunpack.c.l.b16 %v397
      %v1324 = vpack.c.b16 %v1321, %v1320
      %v1325 = vpack.c.b16 %v1323, %v1322
      %v1329 = vsel %vm493, %v1311, 0
      %1331 = vmatprep.subr.bf16.mxu0 0
      %1332 = vmatpush1.bf16.msra.mxu0 0
      %1333 = vmatprep.subr.bf16.mxu0 0
      %1334 = vmatpush1.bf16.msra.mxu0 0
      %1335 = vmatprep.subr.bf16.mxu0 0
      %1336 = vmatpush1.bf16.msra.mxu0 0
      %1337 = vmatprep.subr.bf16.mxu0 0
      %1338 = vmatpush1.bf16.msra.mxu0 0
      %1339 = vmatprep.subr.bf16.mxu0 0
      %1340 = vmatpush1.bf16.msra.mxu0 0
      %1341 = vmatprep.subr.bf16.mxu0 0
      %1342 = vmatpush1.bf16.msra.mxu0 0
      %1343 = vmatprep.subr.bf16.mxu0 0
      %1344 = vmatpush1.bf16.msra.mxu0 %v1325
      %1345 = vmatprep.subr.bf16.mxu0 0
      %1346 = vmatpush1.bf16.msra.mxu0 %v1324
      %1347 = vmatprep.subr.bf16.mxu0 0
      %1348 = vmatpush2.bf16.msra.mxu0 0
      %1349 = vmatprep.subr.bf16.mxu0 0
      %1350 = vmatpush2.bf16.msra.mxu0 0
      %1351 = vmatprep.subr.bf16.mxu0 0
      %1352 = vmatpush2.bf16.msra.mxu0 0
      %1353 = vmatprep.subr.bf16.mxu0 0
      %1354 = vmatpush2.bf16.msra.mxu0 0
      %1355 = vmatprep.subr.bf16.mxu0 0
      %1356 = vmatpush2.bf16.msra.mxu0 0
      %1357 = vmatprep.subr.bf16.mxu0 0
      %1358 = vmatpush2.bf16.msra.mxu0 0
      %1359 = vmatprep.subr.bf16.mxu0 0
      %1360 = vmatpush2.bf16.msra.mxu0 0
      %1361 = vmatprep.subr.bf16.mxu0 0
      %1362 = vmatpush2.bf16.msra.mxu0 0
      %1363 = vmatprep.mubr.bf16.mxu0 0
      %1364 = vmatmul.mubr.bf16.gmra.mxu0 %v1329
      %v1365 = vpop.f32.mrf.mxu0
      %v1366 = vadd.f32 %v1315, %v1365
      %v1367 = vpop.f32.mrf.mxu0
      %v1368 = vpop.f32.mrf.mxu0
      %v1369 = vpop.f32.mrf.mxu0
      %1370 = vdwg.mxu0
      %v1371 = vpack.c.bf16 %v1366, %v1366
      %v1372 = vld [vmem:[%s6] sm:$0xff]
      %v1373 = vld [vmem:[%s6 + $0x8] sm:$0xff]
      %v1374 = vld [vmem:[%s6 + $0x10] sm:$0xff]
      %v1375 = vld [vmem:[%s6 + $0x18] sm:$0xff]
      %v1376 = vld [vmem:[%s6 + $0x20] sm:$0xff]
      %v1377 = vld [vmem:[%s6 + $0x28] sm:$0xff]
      %v1378 = vld [vmem:[%s6 + $0x30] sm:$0xff]
      %v1379 = vld [vmem:[%s6 + $0x38] sm:$0xff]
      %v1380 = vld [vmem:[%s6 + $0x40] sm:$0xff]
      %v1381 = vld [vmem:[%s6 + $0x48] sm:$0xff]
      %v1382 = vld [vmem:[%s6 + $0x50] sm:$0xff]
      %v1383 = vld [vmem:[%s6 + $0x58] sm:$0xff]
      %v1396 = vunpack.c.l.b16 %v1372
      %v1397 = vunpack.c.h.b16 %v1372
      %v1398 = vunpack.c.l.b16 %v1373
      %v1399 = vunpack.c.h.b16 %v1373
      %v1400 = vunpack.c.l.b16 %v1374
      %v1401 = vunpack.c.h.b16 %v1374
      %v1402 = vunpack.c.l.b16 %v1375
      %v1403 = vunpack.c.h.b16 %v1375
      %v1404 = vunpack.c.l.b16 %v1376
      %v1405 = vunpack.c.h.b16 %v1376
      %v1406 = vunpack.c.l.b16 %v1377
      %v1407 = vunpack.c.h.b16 %v1377
      %v1408 = vunpack.c.l.b16 %v1378
      %v1409 = vunpack.c.h.b16 %v1378
      %v1410 = vunpack.c.l.b16 %v1379
      %v1411 = vunpack.c.h.b16 %v1379
      %v1412 = vunpack.c.l.b16 %v1380
      %v1413 = vunpack.c.h.b16 %v1380
      %v1414 = vunpack.c.l.b16 %v1381
      %v1415 = vunpack.c.h.b16 %v1381
      %v1416 = vunpack.c.l.b16 %v1382
      %v1417 = vunpack.c.h.b16 %v1382
      %v1418 = vunpack.c.l.b16 %v1383
      %v1419 = vunpack.c.h.b16 %v1383
      %v1420 = vpack.c.b16 %v1398, %v1396
      %v1421 = vpack.c.b16 %v1399, %v1397
      %v1422 = vpack.c.b16 %v1402, %v1400
      %v1423 = vpack.c.b16 %v1403, %v1401
      %v1424 = vpack.c.b16 %v1406, %v1404
      %v1425 = vpack.c.b16 %v1407, %v1405
      %v1426 = vpack.c.b16 %v1410, %v1408
      %v1427 = vpack.c.b16 %v1411, %v1409
      %v1428 = vpack.c.b16 %v1414, %v1412
      %v1429 = vpack.c.b16 %v1415, %v1413
      %v1430 = vpack.c.b16 %v1418, %v1416
      %v1431 = vpack.c.b16 %v1419, %v1417
      %vm1444 = vcmask 785408
      %v1446 = vsel %vm1444, %v1371, 0
      %1448 = vmatprep.subr.bf16.mxu0 0
      %1449 = vmatpush1.bf16.msra.mxu0 0
      %1450 = vmatprep.subr.bf16.mxu0 0
      %1451 = vmatpush1.bf16.msra.mxu0 0
      %1452 = vmatprep.subr.bf16.mxu0 %v1431
      %1453 = vmatpush1.bf16.msra.mxu0 %v1430
      %1454 = vmatprep.subr.bf16.mxu0 %v1429
      %1455 = vmatpush1.bf16.msra.mxu0 %v1428
      %1456 = vmatprep.subr.bf16.mxu0 %v1427
      %1457 = vmatpush1.bf16.msra.mxu0 %v1426
      %1458 = vmatprep.subr.bf16.mxu0 %v1425
      %1459 = vmatpush1.bf16.msra.mxu0 %v1424
      %1460 = vmatprep.subr.bf16.mxu0 %v1423
      %1461 = vmatpush1.bf16.msra.mxu0 %v1422
      %1462 = vmatprep.subr.bf16.mxu0 %v1421
      %1463 = vmatpush1.bf16.msra.mxu0 %v1420
      %1464 = vmatprep.subr.bf16.mxu0 0
      %1465 = vmatpush2.bf16.msra.mxu0 0
      %1466 = vmatprep.subr.bf16.mxu0 0
      %1467 = vmatpush2.bf16.msra.mxu0 0
      %1468 = vmatprep.subr.bf16.mxu0 0
      %1469 = vmatpush2.bf16.msra.mxu0 0
      %1470 = vmatprep.subr.bf16.mxu0 0
      %1471 = vmatpush2.bf16.msra.mxu0 0
      %1472 = vmatprep.subr.bf16.mxu0 0
      %1473 = vmatpush2.bf16.msra.mxu0 0
      %1474 = vmatprep.subr.bf16.mxu0 0
      %1475 = vmatpush2.bf16.msra.mxu0 0
      %1476 = vmatprep.subr.bf16.mxu0 0
      %1477 = vmatpush2.bf16.msra.mxu0 0
      %1478 = vmatprep.subr.bf16.mxu0 0
      %1479 = vmatpush2.bf16.msra.mxu0 0
      %1480 = vmatprep.mubr.bf16.mxu0 0
      %1481 = vmatmul.mubr.bf16.gmra.mxu0 %v1446
      %v1482 = vpop.f32.mrf.mxu0
      %v1483 = vadd.f32 0.0, %v1482
      %v1484 = vpop.f32.mrf.mxu0
      %v1485 = vadd.f32 0.0, %v1484
      %v1486 = vpop.f32.mrf.mxu0
      %v1487 = vpop.f32.mrf.mxu0
      %1488 = vdwg.mxu0
      %1489 = vst [vmem:[%s375] sm:$0xff] %v1483
      %1490 = vst [vmem:[%s375 + $0x8] sm:$0xff] %v1485
      %v1491 = vld [vmem:[%s370] sm:$0xff]
      %v1492 = vld [vmem:[%s370 + $0x8] sm:$0xff]
      %v1493 = vsel %vm1243, %v1483, -inf
      %1494 = vmax.xlane.f32.xlu0 %v1493
      %v1495 = vpop.xlane.xlu0 %1494
      %v1496 = vsub.f32 %v1483, %v1495
      %v1497 = vmul.f32 %v1496, 1.442695
      %v1498 = vpow.pop %v1497
      %v1499 = vsel %vm1243, %v1498, 0.0
      %1500 = vadd.xlane.f32.xlu0 %v1499
      %v1501 = vpop.xlane.xlu0 %1500
      %v1502 = vlog2.pop %v1501
      %v1503 = vmul.f32 %v1502, 0.6931472
      %v1504 = vadd.f32 %v1495, %v1503
      %v1505 = vmul.f32 %v1491, %v1483
      %v1506 = vsel %vm1243, %v1505, 0.0
      %1507 = vadd.xlane.f32.xlu0 %v1506
      %v1508 = vpop.xlane.xlu0 %1507
      %v1509 = vsel %vm1243, %v1491, 0.0
      %1510 = vadd.xlane.f32.xlu0 %v1509
      %v1511 = vpop.xlane.xlu0 %1510
      %v1512 = vsub.f32 %v1504, %v1508
      %v1513 = vmul.f32 %v1511, %v1512
      %vm1514 = vcmask 7168
      %v1515 = vsel %vm1514, %v1513, 0.0
      %1516 = vadd.xlane.f32.xlu0 %v1515
      %v1517 = vpop.xlane.xlu0 %1516
      %v1518 = vrot.slane %v1517, 4
      %v1519 = vadd.f32 %v1517, %v1518
      %v1520 = vrot.slane %v1519, 2
      %v1521 = vadd.f32 %v1519, %v1520
      %v1522 = vrot.slane %v1521, 1
      %v1523 = vadd.f32 %v1521, %v1522
      %s1524 = vtos %v1523
      %v1525 = vstv %s1524
      %v1526 = vadd.f32 %v1525, 0.0
      %v1527 = vsel %vm1514, %v1511, 0.0
      %1528 = vadd.xlane.f32.xlu0 %v1527
      %v1529 = vpop.xlane.xlu0 %1528
      %v1530 = vrot.slane %v1529, 4
      %v1531 = vadd.f32 %v1529, %v1530
      %v1532 = vrot.slane %v1531, 2
      %v1533 = vadd.f32 %v1531, %v1532
      %v1534 = vrot.slane %v1533, 1
      %v1535 = vadd.f32 %v1533, %v1534
      %s1536 = vtos %v1535
      %v1537 = vstv %s1536
      %v1538 = vadd.f32 %v1537, 0.0
      %vm1539 = vcmask 1048064
      %v1540 = vsel %vm1539, %v1483, -inf
      %1541 = vmax.xlane.f32.xlu0 %v1540
      %v1542 = vpop.xlane.xlu0 %1541
      %v1543 = vsub.f32 %v1483, %v1542
      %v1544 = vmul.f32 %v1543, 1.442695
      %v1545 = vpow.pop %v1544
      %1547 = vrot.lane.b32.xlu0 %v1545, 64
      %v1548 = vpop.permute.xlu0 %1547
      %v1550 = vsel %vm1243, %v1548, 0.0
      %1551 = vadd.xlane.f32.xlu0 %v1550
      %v1552 = vpop.xlane.xlu0 %1551
      %v1553 = vlog2.pop %v1552
      %v1554 = vmul.f32 %v1553, 0.6931472
      %v1555 = vadd.f32 %v1542, %v1554
      %1557 = vrot.lane.b32.xlu0 %v1505, 64
      %v1558 = vpop.permute.xlu0 %1557
      %v1560 = vsel %vm1243, %v1558, 0.0
      %1561 = vadd.xlane.f32.xlu0 %v1560
      %v1562 = vpop.xlane.xlu0 %1561
      %1564 = vrot.lane.b32.xlu0 %v1491, 64
      %v1565 = vpop.permute.xlu0 %1564
      %v1567 = vsel %vm1243, %v1565, 0.0
      %1568 = vadd.xlane.f32.xlu0 %v1567
      %v1569 = vpop.xlane.xlu0 %1568
      %v1570 = vsub.f32 %v1555, %v1562
      %v1571 = vmul.f32 %v1569, %v1570
      %v1572 = vsel %vm1514, %v1571, 0.0
      %1573 = vadd.xlane.f32.xlu0 %v1572
      %v1574 = vpop.xlane.xlu0 %1573
      %v1575 = vrot.slane %v1574, 4
      %v1576 = vadd.f32 %v1574, %v1575
      %v1577 = vrot.slane %v1576, 2
      %v1578 = vadd.f32 %v1576, %v1577
      %v1579 = vrot.slane %v1578, 1
      %v1580 = vadd.f32 %v1578, %v1579
      %s1581 = vtos %v1580
      %v1582 = vstv %s1581
      %v1583 = vadd.f32 %v1526, %v1582
      %v1584 = vsel %vm1514, %v1569, 0.0
      %1585 = vadd.xlane.f32.xlu0 %v1584
      %v1586 = vpop.xlane.xlu0 %1585
      %v1587 = vrot.slane %v1586, 4
      %v1588 = vadd.f32 %v1586, %v1587
      %v1589 = vrot.slane %v1588, 2
      %v1590 = vadd.f32 %v1588, %v1589
      %v1591 = vrot.slane %v1590, 1
      %v1592 = vadd.f32 %v1590, %v1591
      %s1593 = vtos %v1592
      %v1594 = vstv %s1593
      %v1595 = vadd.f32 %v1538, %v1594
      %v1596 = vsel %vm1243, %v1485, -inf
      %1597 = vmax.xlane.f32.xlu0 %v1596
      %v1598 = vpop.xlane.xlu0 %1597
      %v1599 = vsub.f32 %v1485, %v1598
      %v1600 = vmul.f32 %v1599, 1.442695
      %v1601 = vpow.pop %v1600
      %v1602 = vsel %vm1243, %v1601, 0.0
      %1603 = vadd.xlane.f32.xlu0 %v1602
      %v1604 = vpop.xlane.xlu0 %1603
      %v1605 = vlog2.pop %v1604
      %v1606 = vmul.f32 %v1605, 0.6931472
      %v1607 = vadd.f32 %v1598, %v1606
      %v1608 = vmul.f32 %v1492, %v1485
      %v1609 = vsel %vm1243, %v1608, 0.0
      %1610 = vadd.xlane.f32.xlu0 %v1609
      %v1611 = vpop.xlane.xlu0 %1610
      %v1612 = vsel %vm1243, %v1492, 0.0
      %1613 = vadd.xlane.f32.xlu0 %v1612
      %v1614 = vpop.xlane.xlu0 %1613
      %v1615 = vsub.f32 %v1607, %v1611
      %v1616 = vmul.f32 %v1614, %v1615
      %v1617 = vsel %vm1514, %v1616, 0.0
      %1618 = vadd.xlane.f32.xlu0 %v1617
      %v1619 = vpop.xlane.xlu0 %1618
      %v1620 = vrot.slane %v1619, 4
      %v1621 = vadd.f32 %v1619, %v1620
      %v1622 = vrot.slane %v1621, 2
      %v1623 = vadd.f32 %v1621, %v1622
      %v1624 = vrot.slane %v1623, 1
      %v1625 = vadd.f32 %v1623, %v1624
      %s1626 = vtos %v1625
      %v1627 = vstv %s1626
      %v1628 = vadd.f32 %v1583, %v1627
      %v1629 = vsel %vm1514, %v1614, 0.0
      %1630 = vadd.xlane.f32.xlu0 %v1629
      %v1631 = vpop.xlane.xlu0 %1630
      %v1632 = vrot.slane %v1631, 4
      %v1633 = vadd.f32 %v1631, %v1632
      %v1634 = vrot.slane %v1633, 2
      %v1635 = vadd.f32 %v1633, %v1634
      %v1636 = vrot.slane %v1635, 1
      %v1637 = vadd.f32 %v1635, %v1636
      %s1638 = vtos %v1637
      %v1639 = vstv %s1638
      %v1640 = vadd.f32 %v1595, %v1639
      %v1641 = vlaneseq
      %v1642 = vand.u32 %v1641, 127
      %vm1643 = vcmp.eq.s32.totalorder %v1642, 0
      %v1644 = vsel %vm1643, %v1628, 0.0
      %vm1645 = vcmp.eq.s32.totalorder %v1642, 1
      %v1646 = vsel %vm1645, %v1640, 0.0
      %v1647 = vadd.f32 %v1644, %v1646
      %1648 = vst [vmem:[%s378] sm:$0x1] %v1647
      %p1649 = scmp.lt.s32.totalorder %s21, 1
      %s1650 = scalar_select %p1649, %s21, 1
      %s1651 = smul.addr %s1650, 2
      %s1652 = smul.addr %s1651, 8
      %s1653 = scalar_lea.vmem %s8, %s1652
      %p1654 = scmp.lt.s32.totalorder %s21, 1
      %s1655 = scalar_select %p1654, %s21, 1
      %s1656 = scalar_lea.vmem %s9, %s1655
      // Predicated region
      $region53: #{transformer_language_model_forward.1} parent=51 // pred_check
        %p1657 = pneg %p222
      $region54: #{transformer_language_model_forward.1} parent=51 // pred_check_branch
        %1659 = sbr.rel (%p1657) target = $region56
      $region55: #{transformer_language_model_forward.1} parent=51 // pred_region
        _
      $region56: #{transformer_language_model_forward.1} parent=51 // pred_fallthru
        _
      // Predicated region
      $region57: #{transformer_language_model_forward.1} parent=51 // pred_check
        %p1660 = pneg %p248
      $region58: #{transformer_language_model_forward.1} parent=51 // pred_check_branch
        %1662 = sbr.rel (%p1660) target = $region60
      $region59: #{transformer_language_model_forward.1} parent=51 // pred_region
        _
      $region60: #{transformer_language_model_forward.1} parent=51 // pred_fallthru
        _
    $region52: #{transformer_language_model_forward.1} parent=5 // pred_fallthru
      _
    %p1663 = scmp.le.s32.totalorder 2, %s16
    // Predicated region
    $region61: #{transformer_language_model_forward.1} parent=5 // pred_check
      %p1664 = pneg %p1663
    $region62: #{transformer_language_model_forward.1} parent=5 // pred_check_branch
      %1666 = sbr.rel (%p1664) target = $region64
    $region63: #{transformer_language_model_forward.1} parent=5 // pred_region
      %s1667 = ssub.s32 %s16, 2
      // Predicated region
      $region65: #{transformer_language_model_forward.1} parent=63 // pred_check
        %p1668 = pneg %p228
      $region66: #{transformer_language_model_forward.1} parent=63 // pred_check_branch
        %1670 = sbr.rel (%p1668) target = $region68
      $region67: #{transformer_language_model_forward.1} parent=63 // pred_region
        %p1671 = scmp.lt.s32.totalorder %s22, 1
        %s1672 = scalar_select %p1671, %s22, 1
        %s1673 = smul.addr %s1672, 2
        %s1674 = smul.addr %s1673, 8
        %s1675 = scalar_lea.vmem %s8, %s1674
      $region68: #{transformer_language_model_forward.1} parent=63 // pred_fallthru
        _
      // Predicated region
      $region69: #{transformer_language_model_forward.1} parent=63 // pred_check
        %p1676 = pneg %p254
      $region70: #{transformer_language_model_forward.1} parent=63 // pred_check_branch
        %1678 = sbr.rel (%p1676) target = $region72
      $region71: #{transformer_language_model_forward.1} parent=63 // pred_region
        %p1679 = scmp.lt.s32.totalorder %s22, 1
        %s1680 = scalar_select %p1679, %s22, 1
        %s1681 = scalar_lea.vmem %s9, %s1680
      $region72: #{transformer_language_model_forward.1} parent=63 // pred_fallthru
        _
    $region64: #{transformer_language_model_forward.1} parent=5 // pred_fallthru
      _
  $region6: #{transformer_language_model_forward.1} parent=0 // loop_footer
    %s20 = sadd.s32 1, %s16
  $region7: #{transformer_language_model_forward.1} parent=0 // loop_footer_branch
    %15 = sbr.rel target = $region3
  $region8: #{transformer_language_model_forward.1} parent=0 // loop_exit
    _

</llo_original>
